<compile_context>
chip_gen: v7x
topology: tpu7x:2x2x1
jax: 0.10.0
libtpu: 0.0.40
codegen_flags: <defaults>
</compile_context>

<pallas_src>
import functools

import jax
import jax.numpy as jnp
from jax.experimental import pallas as pl
from jax.experimental.pallas import tpu as pltpu

OUT_PAD = 128  # packed output lane width: probs in lanes [0, A), value in lane A


def actor_critic_kernel(
    x_ref,                  # [TB, S] f32
    w1_ref, b1_ref,         # shared layer 1: [S, H] bf16, [1, H] f32
    w2_ref, b2_ref,         # shared layer 2: [H, H] bf16, [1, H] f32
    wh1_ref, bh1_ref,       # fused head layer 1 (= [wa1 | wc1]): [H, H] bf16, [1, H] f32
    wh2_ref, bh2_ref,       # fused head layer 2 (block-diag, lane-padded): [H, OUT_PAD] bf16, [1, OUT_PAD] f32
    out_ref,                # [TB, OUT_PAD] f32 packed: probs lanes [0, A), value lane A, 0 elsewhere
    *, action_dim: int,
):
    bf16 = jnp.bfloat16
    x = x_ref[...].astype(bf16)

    # shared trunk: Linear -> ReLU -> Linear -> ReLU (bf16 MXU inputs, f32 accumulate)
    h = jnp.dot(x, w1_ref[...], preferred_element_type=jnp.float32) + b1_ref[...]
    h = jnp.maximum(h, 0.0)
    h = jnp.dot(h.astype(bf16), w2_ref[...], preferred_element_type=jnp.float32) + b2_ref[...]
    h = jnp.maximum(h, 0.0)

    # fused actor/critic head layer 1: one matmul instead of two
    hc = jnp.dot(h.astype(bf16), wh1_ref[...], preferred_element_type=jnp.float32) + bh1_ref[...]
    hc = jnp.maximum(hc, 0.0)

    # fused head layer 2 (block-diagonal): lanes [0, A) = actor logits, lane A = critic value
    z = jnp.dot(hc.astype(bf16), wh2_ref[...], preferred_element_type=jnp.float32) + bh2_ref[...]

    # lane mask built once as [1, OUT_PAD]; the jnp.where ops broadcast it over the tile
    lane = jax.lax.broadcasted_iota(jnp.int32, (1, z.shape[-1]), dimension=1)
    is_logit = lane < action_dim

    # masked softmax over the logit lanes only (exact normalization: probs feed
    # Categorical sampling / log-prob downstream)
    neg_big = jnp.float32(-1e30)
    m = jnp.max(jnp.where(is_logit, z, neg_big), axis=-1, keepdims=True)
    e = jnp.exp(jnp.where(is_logit, z - m, neg_big))     # exp(-1e30) -> 0 on padded lanes
    probs = e / jnp.sum(e, axis=-1, keepdims=True)

    # pack: probs in logit lanes, raw value in lane A, zeros elsewhere (lane-dense store)
    out_ref[...] = jnp.where(lane == action_dim, z, probs)


def pack_params(p, action_dim, out_pad=OUT_PAD):
    """Host-side, one-time fusion of the actor/critic head weights (+ bf16 cast)."""
    H = p["w2"].shape[0]
    assert H % 2 == 0, "hidden_dim must be even (heads use hidden_dim // 2)"
    assert action_dim + 1 <= out_pad, f"action_dim + 1 must fit in {out_pad} packed lanes"
    H2 = H // 2

    wh1 = jnp.concatenate([p["wa1"], p["wc1"]], axis=1)              # [H, H]
    bh1 = jnp.concatenate([p["ba1"], p["bc1"]], axis=1)              # [1, H]
    wh2 = jnp.zeros((H, out_pad), jnp.float32)
    wh2 = wh2.at[:H2, :action_dim].set(p["wa2"])                     # actor logits block
    wh2 = wh2.at[H2:, action_dim].set(p["wc2"][:, 0])                # critic value column
    bh2 = jnp.zeros((1, out_pad), jnp.float32)
    bh2 = bh2.at[:, :action_dim].set(p["ba2"])
    bh2 = bh2.at[:, action_dim].set(p["bc2"][0, 0])

    bf16 = jnp.bfloat16  # MXU-native on v5e/v6e/v7x; biases stay f32 (added post-accumulate)
    return {"w1": p["w1"].astype(bf16), "b1": p["b1"],
            "w2": p["w2"].astype(bf16), "b2": p["b2"],
            "wh1": wh1.astype(bf16), "bh1": bh1,
            "wh2": wh2.astype(bf16), "bh2": bh2}


def _default_num_batch_tiles(batch):
    """2 balanced tiles on 2-TensorCore chips (v7x) so the 'parallel' grid axis feeds
    both cores; 1 tile (single grid step, no per-step overhead) on v5e/v6e."""
    if batch < 16:
        return 1
    try:
        kind = jax.devices()[0].device_kind.lower()
    except Exception:
        return 1
    return 2 if "v7" in kind else 1


@functools.partial(jax.jit, static_argnames=("action_dim", "num_batch_tiles"))
def _actor_critic_forward(state, packed, *, action_dim, num_batch_tiles):
    B, S = state.shape
    H = packed["w2"].shape[0]

    # balanced batch tiles, rows rounded up to full f32 sublanes (multiple of 8)
    block_b = pl.cdiv(pl.cdiv(B, num_batch_tiles), 8) * 8
    Bp = block_b * num_batch_tiles
    if Bp != B:
        state = jnp.pad(state, ((0, Bp - B), (0, 0)))

    const = lambda i: (0, 0)  # weights/biases resident in VMEM across batch tiles

    # advisory cost hint so XLA schedules the surrounding pad / slice ops sensibly
    flops = 2 * Bp * (S * H + H * H + H * H + H * OUT_PAD)
    bytes_accessed = (Bp * S * 4 + Bp * OUT_PAD * 4                  # f32 x in, packed out
                      + (S * H + H * H + H * H + H * OUT_PAD) * 2    # bf16 weights
                      + (3 * H + OUT_PAD) * 4)                       # f32 biases
    cost = pl.CostEstimate(flops=flops, transcendentals=Bp * OUT_PAD,
                           bytes_accessed=bytes_accessed)

    kernel = functools.partial(actor_critic_kernel, action_dim=action_dim)
    packed_out = pl.pallas_call(
        kernel,
        out_shape=jax.ShapeDtypeStruct((Bp, OUT_PAD), jnp.float32),
        grid_spec=pltpu.PrefetchScalarGridSpec(
            num_scalar_prefetch=0,
            grid=(num_batch_tiles,),
            in_specs=[
                pl.BlockSpec((block_b, S), lambda i: (i, 0)),
                pl.BlockSpec((S, H), const), pl.BlockSpec((1, H), const),
                pl.BlockSpec((H, H), const), pl.BlockSpec((1, H), const),
                pl.BlockSpec((H, H), const), pl.BlockSpec((1, H), const),
                pl.BlockSpec((H, OUT_PAD), const), pl.BlockSpec((1, OUT_PAD), const),
            ],
            out_specs=pl.BlockSpec((block_b, OUT_PAD), lambda i: (i, 0)),
        ),
        compiler_params=pltpu.CompilerParams(
            dimension_semantics=("parallel",),   # shards the batch tiles across v7x's 2 TCs
        ),
        cost_estimate=cost,
    )(state, packed["w1"], packed["b1"], packed["w2"], packed["b2"],
      packed["wh1"], packed["bh1"], packed["wh2"], packed["bh2"])

    probs = packed_out[:B, :action_dim]
    value = packed_out[:B, action_dim:action_dim + 1]
    return probs, value


def actor_critic_forward(state, packed, *, action_dim, num_batch_tiles=None):
    """state: [B, state_dim] f32; packed: output of pack_params. Returns (probs [B,A], value [B,1])."""
    if num_batch_tiles is None:
        num_batch_tiles = _default_num_batch_tiles(state.shape[0])
    return _actor_critic_forward(state, packed, action_dim=action_dim,
                                 num_batch_tiles=num_batch_tiles)


def init_params(key, state_dim, action_dim, hidden_dim):
    """Deterministic synthetic init (PyTorch-like uniform fan-in scaling)."""
    def linear(key, fan_in, fan_out):
        kw, kb = jax.random.split(key)
        bound = 1.0 / jnp.sqrt(jnp.float32(fan_in))
        w = jax.random.uniform(kw, (fan_in, fan_out), jnp.float32, -bound, bound)
        b = jax.random.uniform(kb, (1, fan_out), jnp.float32, -bound, bound)
        return w, b

    keys = jax.random.split(key, 6)
    h2 = hidden_dim // 2
    p = {}
    p["w1"], p["b1"] = linear(keys[0], state_dim, hidden_dim)
    p["w2"], p["b2"] = linear(keys[1], hidden_dim, hidden_dim)
    p["wa1"], p["ba1"] = linear(keys[2], hidden_dim, h2)
    p["wa2"], p["ba2"] = linear(keys[3], h2, action_dim)
    p["wc1"], p["bc1"] = linear(keys[4], hidden_dim, h2)
    p["wc2"], p["bc2"] = linear(keys[5], h2, 1)
    return p


def reference_forward(state, p):
    """Pure-JAX f32 reference matching the PyTorch module semantics."""
    h = jnp.maximum(state @ p["w1"] + p["b1"], 0.0)
    h = jnp.maximum(h @ p["w2"] + p["b2"], 0.0)
    a = jnp.maximum(h @ p["wa1"] + p["ba1"], 0.0)
    probs = jax.nn.softmax(a @ p["wa2"] + p["ba2"], axis=-1)
    c = jnp.maximum(h @ p["wc1"] + p["bc1"], 0.0)
    value = c @ p["wc2"] + p["bc2"]
    return probs, value


if __name__ == "__main__":
    # hidden_dim=128 matches the PyTorch default and is lane-aligned; batch sized
    # to exercise the batch tiling (1 tile on v5e/v6e, 2 balanced tiles on v7x).
    state_dim, action_dim, hidden_dim = 8, 3, 128
    batch = 512

    key = jax.random.PRNGKey(0)
    k_params, k_state = jax.random.split(key)
    params = init_params(k_params, state_dim, action_dim, hidden_dim)
    packed = pack_params(params, action_dim)
    state = jax.random.normal(k_state, (batch, state_dim), jnp.float32)

    probs, value = actor_critic_forward(state, packed, action_dim=action_dim)
    probs, value = jax.block_until_ready((probs, value))

    # sanity check against the pure-JAX f32 reference
    ref_probs, ref_value = reference_forward(state, params)
    assert probs.shape == (batch, action_dim) and value.shape == (batch, 1)
    # kernel runs bf16 MXU inputs with f32 accumulation -> bf16-level tolerances
    assert jnp.allclose(probs, ref_probs, atol=5e-2, rtol=5e-2), \
        float(jnp.max(jnp.abs(probs - ref_probs)))
    assert jnp.allclose(value, ref_value, atol=5e-2, rtol=5e-2), \
        float(jnp.max(jnp.abs(value - ref_value)))
    # exact (non-approx) softmax normalization -> probs sum tightly to 1
    assert jnp.allclose(jnp.sum(probs, axis=-1), 1.0, atol=1e-3)

    # TODO(synk): act()/evaluate() (Categorical sampling, log-prob, entropy) stay in host JAX;
    # only the forward pass is a Pallas kernel.
    print("KERNEL_OK")
</pallas_src>

<mosaic_0001>
module attributes {stable_mosaic.version = 11 : i64} {
  func.func @actor_critic_kernel(%arg0: i32, %arg1: memref<512x8xf32, #tpu.memory_space<vmem>>, %arg2: memref<8x128xbf16, #tpu.memory_space<vmem>>, %arg3: memref<1x128xf32, #tpu.memory_space<vmem>>, %arg4: memref<128x128xbf16, #tpu.memory_space<vmem>>, %arg5: memref<1x128xf32, #tpu.memory_space<vmem>>, %arg6: memref<128x128xbf16, #tpu.memory_space<vmem>>, %arg7: memref<1x128xf32, #tpu.memory_space<vmem>>, %arg8: memref<128x128xbf16, #tpu.memory_space<vmem>>, %arg9: memref<1x128xf32, #tpu.memory_space<vmem>>, %arg10: memref<512x128xf32, #tpu.memory_space<vmem>>) attributes {dimension_semantics = [#tpu.dimension_semantics<parallel>], iteration_bounds = array<i64: 1>, scalar_prefetch = 0 : i64, scratch_operands = 0 : i64, tpu.core_type = #tpu.core_type<tc>, window_params = [{transform_indices = @transform_0, window_bounds = array<i64: 512, 8>}, {pipeline_mode = #tpu.pipeline_mode<synchronous>, transform_indices = @transform_1, window_bounds = array<i64: 8, 128>}, {pipeline_mode = #tpu.pipeline_mode<synchronous>, transform_indices = @transform_2, window_bounds = array<i64: 1, 128>}, {pipeline_mode = #tpu.pipeline_mode<synchronous>, transform_indices = @transform_3, window_bounds = array<i64: 128, 128>}, {pipeline_mode = #tpu.pipeline_mode<synchronous>, transform_indices = @transform_4, window_bounds = array<i64: 1, 128>}, {pipeline_mode = #tpu.pipeline_mode<synchronous>, transform_indices = @transform_5, window_bounds = array<i64: 128, 128>}, {pipeline_mode = #tpu.pipeline_mode<synchronous>, transform_indices = @transform_6, window_bounds = array<i64: 1, 128>}, {pipeline_mode = #tpu.pipeline_mode<synchronous>, transform_indices = @transform_7, window_bounds = array<i64: 128, 128>}, {pipeline_mode = #tpu.pipeline_mode<synchronous>, transform_indices = @transform_8, window_bounds = array<i64: 1, 128>}, {transform_indices = @transform_9, window_bounds = array<i64: 512, 128>}]} {
    %c0 = arith.constant 0 : index
    %c0_0 = arith.constant 0 : index
    %0 = vector.load %arg1[%c0, %c0_0] : memref<512x8xf32, #tpu.memory_space<vmem>>, vector<512x8xf32>
    %1 = arith.truncf %0 : vector<512x8xf32> to vector<512x8xbf16>
    %c0_1 = arith.constant 0 : index
    %c0_2 = arith.constant 0 : index
    %2 = vector.load %arg2[%c0_1, %c0_2] : memref<8x128xbf16, #tpu.memory_space<vmem>>, vector<8x128xbf16>
    %cst = arith.constant dense<0.000000e+00> : vector<512x128xf32>
    %3 = tpu.matmul %1, %2, %cst {dimension_numbers = #tpu.dot_dimension_numbers<[1], [0], [0], [1], [0, 0, 1, 1], [], []>} : vector<512x8xbf16>, vector<8x128xbf16>, vector<512x128xf32> -> vector<512x128xf32>
    %c0_3 = arith.constant 0 : index
    %c0_4 = arith.constant 0 : index
    %4 = vector.load %arg3[%c0_3, %c0_4] : memref<1x128xf32, #tpu.memory_space<vmem>>, vector<1x128xf32>
    %5 = vector.broadcast %4 : vector<1x128xf32> to vector<512x128xf32>
    %6 = arith.addf %3, %5 : vector<512x128xf32>
    %cst_5 = arith.constant 0.000000e+00 : f32
    %7 = vector.broadcast %cst_5 : f32 to vector<512x128xf32>
    %8 = arith.maximumf %6, %7 : vector<512x128xf32>
    %9 = arith.truncf %8 : vector<512x128xf32> to vector<512x128xbf16>
    %c0_6 = arith.constant 0 : index
    %c0_7 = arith.constant 0 : index
    %10 = vector.load %arg4[%c0_6, %c0_7] : memref<128x128xbf16, #tpu.memory_space<vmem>>, vector<128x128xbf16>
    %cst_8 = arith.constant dense<0.000000e+00> : vector<512x128xf32>
    %11 = tpu.matmul %9, %10, %cst_8 {dimension_numbers = #tpu.dot_dimension_numbers<[1], [0], [0], [1], [0, 0, 1, 1], [], []>} : vector<512x128xbf16>, vector<128x128xbf16>, vector<512x128xf32> -> vector<512x128xf32>
    %c0_9 = arith.constant 0 : index
    %c0_10 = arith.constant 0 : index
    %12 = vector.load %arg5[%c0_9, %c0_10] : memref<1x128xf32, #tpu.memory_space<vmem>>, vector<1x128xf32>
    %13 = vector.broadcast %12 : vector<1x128xf32> to vector<512x128xf32>
    %14 = arith.addf %11, %13 : vector<512x128xf32>
    %cst_11 = arith.constant 0.000000e+00 : f32
    %15 = vector.broadcast %cst_11 : f32 to vector<512x128xf32>
    %16 = arith.maximumf %14, %15 : vector<512x128xf32>
    %17 = arith.truncf %16 : vector<512x128xf32> to vector<512x128xbf16>
    %c0_12 = arith.constant 0 : index
    %c0_13 = arith.constant 0 : index
    %18 = vector.load %arg6[%c0_12, %c0_13] : memref<128x128xbf16, #tpu.memory_space<vmem>>, vector<128x128xbf16>
    %cst_14 = arith.constant dense<0.000000e+00> : vector<512x128xf32>
    %19 = tpu.matmul %17, %18, %cst_14 {dimension_numbers = #tpu.dot_dimension_numbers<[1], [0], [0], [1], [0, 0, 1, 1], [], []>} : vector<512x128xbf16>, vector<128x128xbf16>, vector<512x128xf32> -> vector<512x128xf32>
    %c0_15 = arith.constant 0 : index
    %c0_16 = arith.constant 0 : index
    %20 = vector.load %arg7[%c0_15, %c0_16] : memref<1x128xf32, #tpu.memory_space<vmem>>, vector<1x128xf32>
    %21 = vector.broadcast %20 : vector<1x128xf32> to vector<512x128xf32>
    %22 = arith.addf %19, %21 : vector<512x128xf32>
    %cst_17 = arith.constant 0.000000e+00 : f32
    %23 = vector.broadcast %cst_17 : f32 to vector<512x128xf32>
    %24 = arith.maximumf %22, %23 : vector<512x128xf32>
    %25 = arith.truncf %24 : vector<512x128xf32> to vector<512x128xbf16>
    %c0_18 = arith.constant 0 : index
    %c0_19 = arith.constant 0 : index
    %26 = vector.load %arg8[%c0_18, %c0_19] : memref<128x128xbf16, #tpu.memory_space<vmem>>, vector<128x128xbf16>
    %cst_20 = arith.constant dense<0.000000e+00> : vector<512x128xf32>
    %27 = tpu.matmul %25, %26, %cst_20 {dimension_numbers = #tpu.dot_dimension_numbers<[1], [0], [0], [1], [0, 0, 1, 1], [], []>} : vector<512x128xbf16>, vector<128x128xbf16>, vector<512x128xf32> -> vector<512x128xf32>
    %c0_21 = arith.constant 0 : index
    %c0_22 = arith.constant 0 : index
    %28 = vector.load %arg9[%c0_21, %c0_22] : memref<1x128xf32, #tpu.memory_space<vmem>>, vector<1x128xf32>
    %29 = vector.broadcast %28 : vector<1x128xf32> to vector<512x128xf32>
    %30 = arith.addf %27, %29 : vector<512x128xf32>
    %31 = tpu.iota {dimensions = array<i32: 1>} : vector<1x128xi32>
    %c3_i32 = arith.constant 3 : i32
    %32 = vector.broadcast %c3_i32 : i32 to vector<1x128xi32>
    %33 = arith.cmpi slt, %31, %32 : vector<1x128xi32>
    %cst_23 = arith.constant -1.000000e+30 : f32
    %34 = vector.shape_cast %33 : vector<1x128xi1> to vector<1x128xi1>
    %35 = vector.broadcast %34 : vector<1x128xi1> to vector<512x128xi1>
    %36 = vector.broadcast %cst_23 : f32 to vector<512x128xf32>
    %37 = arith.select %35, %30, %36 : vector<512x128xi1>, vector<512x128xf32>
    %cst_24 = arith.constant dense<0xFF800000> : vector<512xf32>
    %38 = vector.multi_reduction <maximumf>, %37, %cst_24 [1] : vector<512x128xf32> to vector<512xf32>
    %39 = vector.shape_cast %38 : vector<512xf32> to vector<512x1xf32>
    %40 = vector.broadcast %39 : vector<512x1xf32> to vector<512x128xf32>
    %41 = arith.subf %30, %40 : vector<512x128xf32>
    %cst_25 = arith.constant -1.000000e+30 : f32
    %42 = vector.shape_cast %33 : vector<1x128xi1> to vector<1x128xi1>
    %43 = vector.broadcast %42 : vector<1x128xi1> to vector<512x128xi1>
    %44 = vector.broadcast %cst_25 : f32 to vector<512x128xf32>
    %45 = arith.select %43, %41, %44 : vector<512x128xi1>, vector<512x128xf32>
    %46 = math.exp %45 : vector<512x128xf32>
    %cst_26 = arith.constant dense<0.000000e+00> : vector<512xf32>
    %47 = vector.multi_reduction <add>, %46, %cst_26 [1] : vector<512x128xf32> to vector<512xf32>
    %48 = vector.shape_cast %47 : vector<512xf32> to vector<512x1xf32>
    %49 = vector.broadcast %48 : vector<512x1xf32> to vector<512x128xf32>
    %50 = arith.divf %46, %49 : vector<512x128xf32>
    %c3_i32_27 = arith.constant 3 : i32
    %51 = vector.broadcast %c3_i32_27 : i32 to vector<1x128xi32>
    %52 = arith.cmpi eq, %31, %51 : vector<1x128xi32>
    %53 = vector.shape_cast %52 : vector<1x128xi1> to vector<1x128xi1>
    %54 = vector.broadcast %53 : vector<1x128xi1> to vector<512x128xi1>
    %55 = arith.select %54, %30, %50 : vector<512x128xi1>, vector<512x128xf32>
    %c0_28 = arith.constant 0 : index
    %c0_29 = arith.constant 0 : index
    %56 = vector.load %arg10[%c0_28, %c0_29] : memref<512x128xf32, #tpu.memory_space<vmem>>, vector<512x128xf32>
    tpu.vector_store %arg10[%c0_28, %c0_29], %55 {strides = array<i32>} : memref<512x128xf32, #tpu.memory_space<vmem>>, vector<512x128xf32>,
    return
  }
  func.func @transform_0(%arg0: i32) -> (i32, i32) {
    %c0_i32 = arith.constant 0 : i32
    %c0_i32_0 = arith.constant 0 : i32
    return %arg0, %c0_i32 : i32, i32
  }
  func.func @transform_1(%arg0: i32) -> (i32, i32) {
    %c0_i32 = arith.constant 0 : i32
    %c0_i32_0 = arith.constant 0 : i32
    %c0_i32_1 = arith.constant 0 : i32
    return %c0_i32, %c0_i32_0 : i32, i32
  }
  func.func @transform_2(%arg0: i32) -> (i32, i32) {
    %c0_i32 = arith.constant 0 : i32
    %c0_i32_0 = arith.constant 0 : i32
    %c0_i32_1 = arith.constant 0 : i32
    return %c0_i32, %c0_i32_0 : i32, i32
  }
  func.func @transform_3(%arg0: i32) -> (i32, i32) {
    %c0_i32 = arith.constant 0 : i32
    %c0_i32_0 = arith.constant 0 : i32
    %c0_i32_1 = arith.constant 0 : i32
    return %c0_i32, %c0_i32_0 : i32, i32
  }
  func.func @transform_4(%arg0: i32) -> (i32, i32) {
    %c0_i32 = arith.constant 0 : i32
    %c0_i32_0 = arith.constant 0 : i32
    %c0_i32_1 = arith.constant 0 : i32
    return %c0_i32, %c0_i32_0 : i32, i32
  }
  func.func @transform_5(%arg0: i32) -> (i32, i32) {
    %c0_i32 = arith.constant 0 : i32
    %c0_i32_0 = arith.constant 0 : i32
    %c0_i32_1 = arith.constant 0 : i32
    return %c0_i32, %c0_i32_0 : i32, i32
  }
  func.func @transform_6(%arg0: i32) -> (i32, i32) {
    %c0_i32 = arith.constant 0 : i32
    %c0_i32_0 = arith.constant 0 : i32
    %c0_i32_1 = arith.constant 0 : i32
    return %c0_i32, %c0_i32_0 : i32, i32
  }
  func.func @transform_7(%arg0: i32) -> (i32, i32) {
    %c0_i32 = arith.constant 0 : i32
    %c0_i32_0 = arith.constant 0 : i32
    %c0_i32_1 = arith.constant 0 : i32
    return %c0_i32, %c0_i32_0 : i32, i32
  }
  func.func @transform_8(%arg0: i32) -> (i32, i32) {
    %c0_i32 = arith.constant 0 : i32
    %c0_i32_0 = arith.constant 0 : i32
    %c0_i32_1 = arith.constant 0 : i32
    return %c0_i32, %c0_i32_0 : i32, i32
  }
  func.func @transform_9(%arg0: i32) -> (i32, i32) {
    %c0_i32 = arith.constant 0 : i32
    %c0_i32_0 = arith.constant 0 : i32
    return %arg0, %c0_i32 : i32, i32
  }
}

</mosaic_0001>

<llo_original>
// kernel: _actor_critic_forward.1
$region0: #{_actor_critic_forward.1}
  #allocation0 [shape = 'u32[]', space=smem, size = 0x4, offset = 0x4, fixed_abs, tag = 'smem constant byte address 0x4 - core index']
  #allocation1 [shape = 'u32[144,128]{1,0:T(1,128)}', space=vmem, size = 0x12000, scoped, tag = 'internal scratch']
  %s0 = inlined_call_operand.vmem [shape: f32[512,8], index: 0, kind: input, shape index: {}]
  %s1 = inlined_call_operand.vmem [shape: bf16[8,128], index: 1, kind: input, shape index: {}]
  %s2 = inlined_call_operand.vmem [shape: f32[1,128], index: 2, kind: input, shape index: {}]
  %s3 = inlined_call_operand.vmem [shape: bf16[128,128], index: 3, kind: input, shape index: {}]
  %s4 = inlined_call_operand.vmem [shape: f32[1,128], index: 4, kind: input, shape index: {}]
  %s5 = inlined_call_operand.vmem [shape: bf16[128,128], index: 5, kind: input, shape index: {}]
  %s6 = inlined_call_operand.vmem [shape: f32[1,128], index: 6, kind: input, shape index: {}]
  %s7 = inlined_call_operand.vmem [shape: bf16[128,128], index: 7, kind: input, shape index: {}]
  %s8 = inlined_call_operand.vmem [shape: f32[1,128], index: 8, kind: input, shape index: {}]
  %s9 = inlined_call_operand.vmem [shape: f32[512,128], index: 9, kind: output, shape index: {}]
  %s10 = sld [smem:[#allocation0]]
  $region46: #{_actor_critic_forward.1} parent=0
    _
  %s12 = ssub.s32 1, %s10
  %s13 = scalar_select 0, %s12, %s10
  // Predicated region
  $region2: #{_actor_critic_forward.1} parent=0 // pred_check
    _
  $region3: #{_actor_critic_forward.1} parent=0 // pred_check_branch
    %15 = sbr.rel (0) target = $region5
  $region4: #{_actor_critic_forward.1} parent=0 // pred_region
    _
  $region5: #{_actor_critic_forward.1} parent=0 // pred_fallthru
    _
  // Predicated region
  $region6: #{_actor_critic_forward.1} parent=0 // pred_check
    _
  $region7: #{_actor_critic_forward.1} parent=0 // pred_check_branch
    %17 = sbr.rel (0) target = $region9
  $region8: #{_actor_critic_forward.1} parent=0 // pred_region
    _
  $region9: #{_actor_critic_forward.1} parent=0 // pred_fallthru
    _
  // Predicated region
  $region10: #{_actor_critic_forward.1} parent=0 // pred_check
    _
  $region11: #{_actor_critic_forward.1} parent=0 // pred_check_branch
    %19 = sbr.rel (0) target = $region13
  $region12: #{_actor_critic_forward.1} parent=0 // pred_region
    _
  $region13: #{_actor_critic_forward.1} parent=0 // pred_fallthru
    _
  // Predicated region
  $region14: #{_actor_critic_forward.1} parent=0 // pred_check
    _
  $region15: #{_actor_critic_forward.1} parent=0 // pred_check_branch
    %21 = sbr.rel (0) target = $region17
  $region16: #{_actor_critic_forward.1} parent=0 // pred_region
    _
  $region17: #{_actor_critic_forward.1} parent=0 // pred_fallthru
    _
  // Predicated region
  $region18: #{_actor_critic_forward.1} parent=0 // pred_check
    _
  $region19: #{_actor_critic_forward.1} parent=0 // pred_check_branch
    %23 = sbr.rel (0) target = $region21
  $region20: #{_actor_critic_forward.1} parent=0 // pred_region
    _
  $region21: #{_actor_critic_forward.1} parent=0 // pred_fallthru
    _
  // Predicated region
  $region22: #{_actor_critic_forward.1} parent=0 // pred_check
    _
  $region23: #{_actor_critic_forward.1} parent=0 // pred_check_branch
    %25 = sbr.rel (0) target = $region25
  $region24: #{_actor_critic_forward.1} parent=0 // pred_region
    _
  $region25: #{_actor_critic_forward.1} parent=0 // pred_fallthru
    _
  // Predicated region
  $region26: #{_actor_critic_forward.1} parent=0 // pred_check
    _
  $region27: #{_actor_critic_forward.1} parent=0 // pred_check_branch
    %27 = sbr.rel (0) target = $region29
  $region28: #{_actor_critic_forward.1} parent=0 // pred_region
    _
  $region29: #{_actor_critic_forward.1} parent=0 // pred_fallthru
    _
  // Predicated region
  $region30: #{_actor_critic_forward.1} parent=0 // pred_check
    _
  $region31: #{_actor_critic_forward.1} parent=0 // pred_check_branch
    %29 = sbr.rel (0) target = $region33
  $region32: #{_actor_critic_forward.1} parent=0 // pred_region
    _
  $region33: #{_actor_critic_forward.1} parent=0 // pred_fallthru
    _
  // Predicated region
  $region34: #{_actor_critic_forward.1} parent=0 // pred_check
    _
  $region35: #{_actor_critic_forward.1} parent=0 // pred_check_branch
    %31 = sbr.rel (0) target = $region37
  $region36: #{_actor_critic_forward.1} parent=0 // pred_region
    _
  $region37: #{_actor_critic_forward.1} parent=0 // pred_fallthru
    _
  %v33 = vld [vmem:[%s0] sm:$0xff]
  %v34 = vld [vmem:[%s0 + $0x8] sm:$0xff]
  %v35 = vld [vmem:[%s0 + $0x10] sm:$0xff]
  %v36 = vld [vmem:[%s0 + $0x18] sm:$0xff]
  %v37 = vld [vmem:[%s0 + $0x20] sm:$0xff]
  %v38 = vld [vmem:[%s0 + $0x28] sm:$0xff]
  %v39 = vld [vmem:[%s0 + $0x30] sm:$0xff]
  %v40 = vld [vmem:[%s0 + $0x38] sm:$0xff]
  %v41 = vld [vmem:[%s0 + $0x40] sm:$0xff]
  %v42 = vld [vmem:[%s0 + $0x48] sm:$0xff]
  %v43 = vld [vmem:[%s0 + $0x50] sm:$0xff]
  %v44 = vld [vmem:[%s0 + $0x58] sm:$0xff]
  %v45 = vld [vmem:[%s0 + $0x60] sm:$0xff]
  %v46 = vld [vmem:[%s0 + $0x68] sm:$0xff]
  %v47 = vld [vmem:[%s0 + $0x70] sm:$0xff]
  %v48 = vld [vmem:[%s0 + $0x78] sm:$0xff]
  %v49 = vld [vmem:[%s0 + $0x80] sm:$0xff]
  %v50 = vld [vmem:[%s0 + $0x88] sm:$0xff]
  %v51 = vld [vmem:[%s0 + $0x90] sm:$0xff]
  %v52 = vld [vmem:[%s0 + $0x98] sm:$0xff]
  %v53 = vld [vmem:[%s0 + $0xa0] sm:$0xff]
  %v54 = vld [vmem:[%s0 + $0xa8] sm:$0xff]
  %v55 = vld [vmem:[%s0 + $0xb0] sm:$0xff]
  %v56 = vld [vmem:[%s0 + $0xb8] sm:$0xff]
  %v57 = vld [vmem:[%s0 + $0xc0] sm:$0xff]
  %v58 = vld [vmem:[%s0 + $0xc8] sm:$0xff]
  %v59 = vld [vmem:[%s0 + $0xd0] sm:$0xff]
  %v60 = vld [vmem:[%s0 + $0xd8] sm:$0xff]
  %v61 = vld [vmem:[%s0 + $0xe0] sm:$0xff]
  %v62 = vld [vmem:[%s0 + $0xe8] sm:$0xff]
  %v63 = vld [vmem:[%s0 + $0xf0] sm:$0xff]
  %v64 = vld [vmem:[%s0 + $0xf8] sm:$0xff]
  %v65 = vld [vmem:[%s0 + $0x100] sm:$0xff]
  %v66 = vld [vmem:[%s0 + $0x108] sm:$0xff]
  %v67 = vld [vmem:[%s0 + $0x110] sm:$0xff]
  %v68 = vld [vmem:[%s0 + $0x118] sm:$0xff]
  %v69 = vld [vmem:[%s0 + $0x120] sm:$0xff]
  %v70 = vld [vmem:[%s0 + $0x128] sm:$0xff]
  %v71 = vld [vmem:[%s0 + $0x130] sm:$0xff]
  %v72 = vld [vmem:[%s0 + $0x138] sm:$0xff]
  %v73 = vld [vmem:[%s0 + $0x140] sm:$0xff]
  %v74 = vld [vmem:[%s0 + $0x148] sm:$0xff]
  %v75 = vld [vmem:[%s0 + $0x150] sm:$0xff]
  %v76 = vld [vmem:[%s0 + $0x158] sm:$0xff]
  %v77 = vld [vmem:[%s0 + $0x160] sm:$0xff]
  %v78 = vld [vmem:[%s0 + $0x168] sm:$0xff]
  %v79 = vld [vmem:[%s0 + $0x170] sm:$0xff]
  %v80 = vld [vmem:[%s0 + $0x178] sm:$0xff]
  %v81 = vld [vmem:[%s0 + $0x180] sm:$0xff]
  %v82 = vld [vmem:[%s0 + $0x188] sm:$0xff]
  %v83 = vld [vmem:[%s0 + $0x190] sm:$0xff]
  %v84 = vld [vmem:[%s0 + $0x198] sm:$0xff]
  %v85 = vld [vmem:[%s0 + $0x1a0] sm:$0xff]
  %v86 = vld [vmem:[%s0 + $0x1a8] sm:$0xff]
  %v87 = vld [vmem:[%s0 + $0x1b0] sm:$0xff]
  %v88 = vld [vmem:[%s0 + $0x1b8] sm:$0xff]
  %v89 = vld [vmem:[%s0 + $0x1c0] sm:$0xff]
  %v90 = vld [vmem:[%s0 + $0x1c8] sm:$0xff]
  %v91 = vld [vmem:[%s0 + $0x1d0] sm:$0xff]
  %v92 = vld [vmem:[%s0 + $0x1d8] sm:$0xff]
  %v93 = vld [vmem:[%s0 + $0x1e0] sm:$0xff]
  %v94 = vld [vmem:[%s0 + $0x1e8] sm:$0xff]
  %v95 = vld [vmem:[%s0 + $0x1f0] sm:$0xff]
  %v96 = vld [vmem:[%s0 + $0x1f8] sm:$0xff]
  %v97 = vpack.c.bf16 %v34, %v33
  %v98 = vpack.c.bf16 %v36, %v35
  %v99 = vpack.c.bf16 %v38, %v37
  %v100 = vpack.c.bf16 %v40, %v39
  %v101 = vpack.c.bf16 %v42, %v41
  %v102 = vpack.c.bf16 %v44, %v43
  %v103 = vpack.c.bf16 %v46, %v45
  %v104 = vpack.c.bf16 %v48, %v47
  %v105 = vpack.c.bf16 %v50, %v49
  %v106 = vpack.c.bf16 %v52, %v51
  %v107 = vpack.c.bf16 %v54, %v53
  %v108 = vpack.c.bf16 %v56, %v55
  %v109 = vpack.c.bf16 %v58, %v57
  %v110 = vpack.c.bf16 %v60, %v59
  %v111 = vpack.c.bf16 %v62, %v61
  %v112 = vpack.c.bf16 %v64, %v63
  %v113 = vpack.c.bf16 %v66, %v65
  %v114 = vpack.c.bf16 %v68, %v67
  %v115 = vpack.c.bf16 %v70, %v69
  %v116 = vpack.c.bf16 %v72, %v71
  %v117 = vpack.c.bf16 %v74, %v73
  %v118 = vpack.c.bf16 %v76, %v75
  %v119 = vpack.c.bf16 %v78, %v77
  %v120 = vpack.c.bf16 %v80, %v79
  %v121 = vpack.c.bf16 %v82, %v81
  %v122 = vpack.c.bf16 %v84, %v83
  %v123 = vpack.c.bf16 %v86, %v85
  %v124 = vpack.c.bf16 %v88, %v87
  %v125 = vpack.c.bf16 %v90, %v89
  %v126 = vpack.c.bf16 %v92, %v91
  %v127 = vpack.c.bf16 %v94, %v93
  %v128 = vpack.c.bf16 %v96, %v95
  %v129 = vld [vmem:[%s1] sm:$0xf]
  %v130 = vld [vmem:[%s2] sm:$0x1]
  %v132 = vlaneseq
  %v133 = vshrl.u32 %v132, 7
  %v134 = vsub.s32 0, %v133
  %v135 = vrot.slane %v130, %v134
  %vm137 = vcmask 64512
  %v139 = vsel %vm137, %v97, 0
  %v142 = vsel %vm137, %v98, 0
  %v145 = vsel %vm137, %v99, 0
  %v148 = vsel %vm137, %v100, 0
  %v151 = vsel %vm137, %v101, 0
  %v154 = vsel %vm137, %v102, 0
  %v157 = vsel %vm137, %v103, 0
  %v160 = vsel %vm137, %v104, 0
  %v163 = vsel %vm137, %v105, 0
  %v166 = vsel %vm137, %v106, 0
  %v169 = vsel %vm137, %v107, 0
  %v172 = vsel %vm137, %v108, 0
  %v175 = vsel %vm137, %v109, 0
  %v178 = vsel %vm137, %v110, 0
  %v181 = vsel %vm137, %v111, 0
  %v184 = vsel %vm137, %v112, 0
  %v187 = vsel %vm137, %v113, 0
  %v190 = vsel %vm137, %v114, 0
  %v193 = vsel %vm137, %v115, 0
  %v196 = vsel %vm137, %v116, 0
  %v199 = vsel %vm137, %v117, 0
  %v202 = vsel %vm137, %v118, 0
  %v205 = vsel %vm137, %v119, 0
  %v208 = vsel %vm137, %v120, 0
  %v211 = vsel %vm137, %v121, 0
  %v214 = vsel %vm137, %v122, 0
  %v217 = vsel %vm137, %v123, 0
  %v220 = vsel %vm137, %v124, 0
  %v223 = vsel %vm137, %v125, 0
  %v226 = vsel %vm137, %v126, 0
  %v229 = vsel %vm137, %v127, 0
  %v232 = vsel %vm137, %v128, 0
  %vm234 = vcmask 1043456
  %v236 = vsel %vm234, %v129, 0
  %238 = vmatprep.subr.bf16.mxu0 0
  %239 = vmatpush1.bf16.msra.mxu0 %v236
  %240 = vmatprep.subr.bf16.mxu0 0
  %241 = vmatpush1.bf16.msra.mxu0 0
  %242 = vmatprep.subr.bf16.mxu0 0
  %243 = vmatpush1.bf16.msra.mxu0 0
  %244 = vmatprep.subr.bf16.mxu0 0
  %245 = vmatpush1.bf16.msra.mxu0 0
  %246 = vmatprep.subr.bf16.mxu0 0
  %247 = vmatpush1.bf16.msra.mxu0 0
  %248 = vmatprep.subr.bf16.mxu0 0
  %249 = vmatpush1.bf16.msra.mxu0 0
  %250 = vmatprep.subr.bf16.mxu0 0
  %251 = vmatpush1.bf16.msra.mxu0 0
  %252 = vmatprep.subr.bf16.mxu0 0
  %253 = vmatpush1.bf16.msra.mxu0 0
  %254 = vmatprep.subr.bf16.mxu0 0
  %255 = vmatpush1.bf16.msra.mxu0 0
  %256 = vmatprep.subr.bf16.mxu0 0
  %257 = vmatpush1.bf16.msra.mxu0 0
  %258 = vmatprep.subr.bf16.mxu0 0
  %259 = vmatpush1.bf16.msra.mxu0 0
  %260 = vmatprep.subr.bf16.mxu0 0
  %261 = vmatpush1.bf16.msra.mxu0 0
  %262 = vmatprep.subr.bf16.mxu0 0
  %263 = vmatpush1.bf16.msra.mxu0 0
  %264 = vmatprep.subr.bf16.mxu0 0
  %265 = vmatpush1.bf16.msra.mxu0 0
  %266 = vmatprep.subr.bf16.mxu0 0
  %267 = vmatpush1.bf16.msra.mxu0 0
  %268 = vmatprep.subr.bf16.mxu0 0
  %269 = vmatpush1.bf16.msra.mxu0 0
  %270 = vmatprep.mubr.bf16.mxu0 0
  %271 = vmatmul.mubr.bf16.gmra.mrb[0].mxu0 %v139
  %v272 = vpop.f32.mrb[0].mxu0
  %v273 = vadd.f32 %v135, %v272
  %v274 = vpop.f32.mrb[0].mxu0
  %v275 = vpop.f32.mrb[0].mxu0
  %v276 = vadd.f32 %v135, %v275
  %v277 = vpop.f32.mrb[0].mxu0
  %278 = vmatprep.mubr.bf16.mxu0 0
  %279 = vmatmul.mubr.bf16.gmra.mrb[0].mxu0 %v142
  %v280 = vpop.f32.mrb[0].mxu0
  %v281 = vadd.f32 %v135, %v280
  %v282 = vpop.f32.mrb[0].mxu0
  %v283 = vpop.f32.mrb[0].mxu0
  %v284 = vadd.f32 %v135, %v283
  %v285 = vpop.f32.mrb[0].mxu0
  %286 = vmatprep.mubr.bf16.mxu0 0
  %287 = vmatmul.mubr.bf16.gmra.mrb[0].mxu0 %v145
  %v288 = vpop.f32.mrb[0].mxu0
  %v289 = vadd.f32 %v135, %v288
  %v290 = vpop.f32.mrb[0].mxu0
  %v291 = vpop.f32.mrb[0].mxu0
  %v292 = vadd.f32 %v135, %v291
  %v293 = vpop.f32.mrb[0].mxu0
  %294 = vmatprep.mubr.bf16.mxu0 0
  %295 = vmatmul.mubr.bf16.gmra.mrb[0].mxu0 %v148
  %v296 = vpop.f32.mrb[0].mxu0
  %v297 = vadd.f32 %v135, %v296
  %v298 = vpop.f32.mrb[0].mxu0
  %v299 = vpop.f32.mrb[0].mxu0
  %v300 = vadd.f32 %v135, %v299
  %v301 = vpop.f32.mrb[0].mxu0
  %302 = vmatprep.mubr.bf16.mxu0 0
  %303 = vmatmul.mubr.bf16.gmra.mrb[0].mxu0 %v151
  %v304 = vpop.f32.mrb[0].mxu0
  %v305 = vadd.f32 %v135, %v304
  %v306 = vpop.f32.mrb[0].mxu0
  %v307 = vpop.f32.mrb[0].mxu0
  %v308 = vadd.f32 %v135, %v307
  %v309 = vpop.f32.mrb[0].mxu0
  %310 = vmatprep.mubr.bf16.mxu0 0
  %311 = vmatmul.mubr.bf16.gmra.mrb[0].mxu0 %v154
  %v312 = vpop.f32.mrb[0].mxu0
  %v313 = vadd.f32 %v135, %v312
  %v314 = vpop.f32.mrb[0].mxu0
  %v315 = vpop.f32.mrb[0].mxu0
  %v316 = vadd.f32 %v135, %v315
  %v317 = vpop.f32.mrb[0].mxu0
  %318 = vmatprep.mubr.bf16.mxu0 0
  %319 = vmatmul.mubr.bf16.gmra.mrb[0].mxu0 %v157
  %v320 = vpop.f32.mrb[0].mxu0
  %v321 = vadd.f32 %v135, %v320
  %v322 = vpop.f32.mrb[0].mxu0
  %v323 = vpop.f32.mrb[0].mxu0
  %v324 = vadd.f32 %v135, %v323
  %v325 = vpop.f32.mrb[0].mxu0
  %326 = vmatprep.mubr.bf16.mxu0 0
  %327 = vmatmul.mubr.bf16.gmra.mrb[0].mxu0 %v160
  %v328 = vpop.f32.mrb[0].mxu0
  %v329 = vadd.f32 %v135, %v328
  %v330 = vpop.f32.mrb[0].mxu0
  %v331 = vpop.f32.mrb[0].mxu0
  %v332 = vadd.f32 %v135, %v331
  %v333 = vpop.f32.mrb[0].mxu0
  %334 = vmatprep.mubr.bf16.mxu0 0
  %335 = vmatmul.mubr.bf16.gmra.mrb[0].mxu0 %v163
  %v336 = vpop.f32.mrb[0].mxu0
  %v337 = vadd.f32 %v135, %v336
  %v338 = vpop.f32.mrb[0].mxu0
  %v339 = vpop.f32.mrb[0].mxu0
  %v340 = vadd.f32 %v135, %v339
  %v341 = vpop.f32.mrb[0].mxu0
  %342 = vmatprep.mubr.bf16.mxu0 0
  %343 = vmatmul.mubr.bf16.gmra.mrb[0].mxu0 %v166
  %v344 = vpop.f32.mrb[0].mxu0
  %v345 = vadd.f32 %v135, %v344
  %v346 = vpop.f32.mrb[0].mxu0
  %v347 = vpop.f32.mrb[0].mxu0
  %v348 = vadd.f32 %v135, %v347
  %v349 = vpop.f32.mrb[0].mxu0
  %350 = vmatprep.mubr.bf16.mxu0 0
  %351 = vmatmul.mubr.bf16.gmra.mrb[0].mxu0 %v169
  %v352 = vpop.f32.mrb[0].mxu0
  %v353 = vadd.f32 %v135, %v352
  %v354 = vpop.f32.mrb[0].mxu0
  %v355 = vpop.f32.mrb[0].mxu0
  %v356 = vadd.f32 %v135, %v355
  %v357 = vpop.f32.mrb[0].mxu0
  %358 = vmatprep.mubr.bf16.mxu0 0
  %359 = vmatmul.mubr.bf16.gmra.mrb[0].mxu0 %v172
  %v360 = vpop.f32.mrb[0].mxu0
  %v361 = vadd.f32 %v135, %v360
  %v362 = vpop.f32.mrb[0].mxu0
  %v363 = vpop.f32.mrb[0].mxu0
  %v364 = vadd.f32 %v135, %v363
  %v365 = vpop.f32.mrb[0].mxu0
  %366 = vmatprep.mubr.bf16.mxu0 0
  %367 = vmatmul.mubr.bf16.gmra.mrb[0].mxu0 %v175
  %v368 = vpop.f32.mrb[0].mxu0
  %v369 = vadd.f32 %v135, %v368
  %v370 = vpop.f32.mrb[0].mxu0
  %v371 = vpop.f32.mrb[0].mxu0
  %v372 = vadd.f32 %v135, %v371
  %v373 = vpop.f32.mrb[0].mxu0
  %374 = vmatprep.mubr.bf16.mxu0 0
  %375 = vmatmul.mubr.bf16.gmra.mrb[0].mxu0 %v178
  %v376 = vpop.f32.mrb[0].mxu0
  %v377 = vadd.f32 %v135, %v376
  %v378 = vpop.f32.mrb[0].mxu0
  %v379 = vpop.f32.mrb[0].mxu0
  %v380 = vadd.f32 %v135, %v379
  %v381 = vpop.f32.mrb[0].mxu0
  %382 = vmatprep.mubr.bf16.mxu0 0
  %383 = vmatmul.mubr.bf16.gmra.mrb[0].mxu0 %v181
  %v384 = vpop.f32.mrb[0].mxu0
  %v385 = vadd.f32 %v135, %v384
  %v386 = vpop.f32.mrb[0].mxu0
  %v387 = vpop.f32.mrb[0].mxu0
  %v388 = vadd.f32 %v135, %v387
  %v389 = vpop.f32.mrb[0].mxu0
  %390 = vmatprep.mubr.bf16.mxu0 0
  %391 = vmatmul.mubr.bf16.gmra.mrb[0].mxu0 %v184
  %v392 = vpop.f32.mrb[0].mxu0
  %v393 = vadd.f32 %v135, %v392
  %v394 = vpop.f32.mrb[0].mxu0
  %v395 = vpop.f32.mrb[0].mxu0
  %v396 = vadd.f32 %v135, %v395
  %v397 = vpop.f32.mrb[0].mxu0
  %398 = vmatprep.mubr.bf16.mxu0 0
  %399 = vmatmul.mubr.bf16.gmra.mrb[0].mxu0 %v187
  %v400 = vpop.f32.mrb[0].mxu0
  %v401 = vadd.f32 %v135, %v400
  %v402 = vpop.f32.mrb[0].mxu0
  %v403 = vpop.f32.mrb[0].mxu0
  %v404 = vadd.f32 %v135, %v403
  %v405 = vpop.f32.mrb[0].mxu0
  %406 = vmatprep.mubr.bf16.mxu0 0
  %407 = vmatmul.mubr.bf16.gmra.mrb[0].mxu0 %v190
  %v408 = vpop.f32.mrb[0].mxu0
  %v409 = vadd.f32 %v135, %v408
  %v410 = vpop.f32.mrb[0].mxu0
  %v411 = vpop.f32.mrb[0].mxu0
  %v412 = vadd.f32 %v135, %v411
  %v413 = vpop.f32.mrb[0].mxu0
  %414 = vmatprep.mubr.bf16.mxu0 0
  %415 = vmatmul.mubr.bf16.gmra.mrb[0].mxu0 %v193
  %v416 = vpop.f32.mrb[0].mxu0
  %v417 = vadd.f32 %v135, %v416
  %v418 = vpop.f32.mrb[0].mxu0
  %v419 = vpop.f32.mrb[0].mxu0
  %v420 = vadd.f32 %v135, %v419
  %v421 = vpop.f32.mrb[0].mxu0
  %422 = vmatprep.mubr.bf16.mxu0 0
  %423 = vmatmul.mubr.bf16.gmra.mrb[0].mxu0 %v196
  %v424 = vpop.f32.mrb[0].mxu0
  %v425 = vadd.f32 %v135, %v424
  %v426 = vpop.f32.mrb[0].mxu0
  %v427 = vpop.f32.mrb[0].mxu0
  %v428 = vadd.f32 %v135, %v427
  %v429 = vpop.f32.mrb[0].mxu0
  %430 = vmatprep.mubr.bf16.mxu0 0
  %431 = vmatmul.mubr.bf16.gmra.mrb[0].mxu0 %v199
  %v432 = vpop.f32.mrb[0].mxu0
  %v433 = vadd.f32 %v135, %v432
  %v434 = vpop.f32.mrb[0].mxu0
  %v435 = vpop.f32.mrb[0].mxu0
  %v436 = vadd.f32 %v135, %v435
  %v437 = vpop.f32.mrb[0].mxu0
  %438 = vmatprep.mubr.bf16.mxu0 0
  %439 = vmatmul.mubr.bf16.gmra.mrb[0].mxu0 %v202
  %v440 = vpop.f32.mrb[0].mxu0
  %v441 = vadd.f32 %v135, %v440
  %v442 = vpop.f32.mrb[0].mxu0
  %v443 = vpop.f32.mrb[0].mxu0
  %v444 = vadd.f32 %v135, %v443
  %v445 = vpop.f32.mrb[0].mxu0
  %446 = vmatprep.mubr.bf16.mxu0 0
  %447 = vmatmul.mubr.bf16.gmra.mrb[0].mxu0 %v205
  %v448 = vpop.f32.mrb[0].mxu0
  %v449 = vadd.f32 %v135, %v448
  %v450 = vpop.f32.mrb[0].mxu0
  %v451 = vpop.f32.mrb[0].mxu0
  %v452 = vadd.f32 %v135, %v451
  %v453 = vpop.f32.mrb[0].mxu0
  %454 = vmatprep.mubr.bf16.mxu0 0
  %455 = vmatmul.mubr.bf16.gmra.mrb[0].mxu0 %v208
  %v456 = vpop.f32.mrb[0].mxu0
  %v457 = vadd.f32 %v135, %v456
  %v458 = vpop.f32.mrb[0].mxu0
  %v459 = vpop.f32.mrb[0].mxu0
  %v460 = vadd.f32 %v135, %v459
  %v461 = vpop.f32.mrb[0].mxu0
  %462 = vmatprep.mubr.bf16.mxu0 0
  %463 = vmatmul.mubr.bf16.gmra.mrb[0].mxu0 %v211
  %v464 = vpop.f32.mrb[0].mxu0
  %v465 = vadd.f32 %v135, %v464
  %v466 = vpop.f32.mrb[0].mxu0
  %v467 = vpop.f32.mrb[0].mxu0
  %v468 = vadd.f32 %v135, %v467
  %v469 = vpop.f32.mrb[0].mxu0
  %470 = vmatprep.mubr.bf16.mxu0 0
  %471 = vmatmul.mubr.bf16.gmra.mrb[0].mxu0 %v214
  %v472 = vpop.f32.mrb[0].mxu0
  %v473 = vadd.f32 %v135, %v472
  %v474 = vpop.f32.mrb[0].mxu0
  %v475 = vpop.f32.mrb[0].mxu0
  %v476 = vadd.f32 %v135, %v475
  %v477 = vpop.f32.mrb[0].mxu0
  %478 = vmatprep.mubr.bf16.mxu0 0
  %479 = vmatmul.mubr.bf16.gmra.mrb[0].mxu0 %v217
  %v480 = vpop.f32.mrb[0].mxu0
  %v481 = vadd.f32 %v135, %v480
  %v482 = vpop.f32.mrb[0].mxu0
  %v483 = vpop.f32.mrb[0].mxu0
  %v484 = vadd.f32 %v135, %v483
  %v485 = vpop.f32.mrb[0].mxu0
  %486 = vmatprep.mubr.bf16.mxu0 0
  %487 = vmatmul.mubr.bf16.gmra.mrb[0].mxu0 %v220
  %v488 = vpop.f32.mrb[0].mxu0
  %v489 = vadd.f32 %v135, %v488
  %v490 = vpop.f32.mrb[0].mxu0
  %v491 = vpop.f32.mrb[0].mxu0
  %v492 = vadd.f32 %v135, %v491
  %v493 = vpop.f32.mrb[0].mxu0
  %494 = vmatprep.mubr.bf16.mxu0 0
  %495 = vmatmul.mubr.bf16.gmra.mrb[0].mxu0 %v223
  %v496 = vpop.f32.mrb[0].mxu0
  %v497 = vadd.f32 %v135, %v496
  %v498 = vpop.f32.mrb[0].mxu0
  %v499 = vpop.f32.mrb[0].mxu0
  %v500 = vadd.f32 %v135, %v499
  %v501 = vpop.f32.mrb[0].mxu0
  %502 = vmatprep.mubr.bf16.mxu0 0
  %503 = vmatmul.mubr.bf16.gmra.mrb[0].mxu0 %v226
  %v504 = vpop.f32.mrb[0].mxu0
  %v505 = vadd.f32 %v135, %v504
  %v506 = vpop.f32.mrb[0].mxu0
  %v507 = vpop.f32.mrb[0].mxu0
  %v508 = vadd.f32 %v135, %v507
  %v509 = vpop.f32.mrb[0].mxu0
  %510 = vmatprep.mubr.bf16.mxu0 0
  %511 = vmatmul.mubr.bf16.gmra.mrb[0].mxu0 %v229
  %v512 = vpop.f32.mrb[0].mxu0
  %v513 = vadd.f32 %v135, %v512
  %v514 = vpop.f32.mrb[0].mxu0
  %v515 = vpop.f32.mrb[0].mxu0
  %v516 = vadd.f32 %v135, %v515
  %v517 = vpop.f32.mrb[0].mxu0
  %518 = vmatprep.mubr.bf16.mxu0 0
  %519 = vmatmul.mubr.bf16.gmra.mrb[0].mxu0 %v232
  %v520 = vpop.f32.mrb[0].mxu0
  %v521 = vadd.f32 %v135, %v520
  %v522 = vpop.f32.mrb[0].mxu0
  %v523 = vpop.f32.mrb[0].mxu0
  %v524 = vadd.f32 %v135, %v523
  %v525 = vpop.f32.mrb[0].mxu0
  %526 = vdwg.mxu0
  %v527 = vmax.f32 %v273, 0.0
  %v528 = vmax.f32 %v276, 0.0
  %v529 = vmax.f32 %v281, 0.0
  %v530 = vmax.f32 %v284, 0.0
  %v531 = vmax.f32 %v289, 0.0
  %v532 = vmax.f32 %v292, 0.0
  %v533 = vmax.f32 %v297, 0.0
  %v534 = vmax.f32 %v300, 0.0
  %v535 = vmax.f32 %v305, 0.0
  %v536 = vmax.f32 %v308, 0.0
  %v537 = vmax.f32 %v313, 0.0
  %v538 = vmax.f32 %v316, 0.0
  %v539 = vmax.f32 %v321, 0.0
  %v540 = vmax.f32 %v324, 0.0
  %v541 = vmax.f32 %v329, 0.0
  %v542 = vmax.f32 %v332, 0.0
  %v543 = vmax.f32 %v337, 0.0
  %v544 = vmax.f32 %v340, 0.0
  %v545 = vmax.f32 %v345, 0.0
  %v546 = vmax.f32 %v348, 0.0
  %v547 = vmax.f32 %v353, 0.0
  %v548 = vmax.f32 %v356, 0.0
  %v549 = vmax.f32 %v361, 0.0
  %v550 = vmax.f32 %v364, 0.0
  %v551 = vmax.f32 %v369, 0.0
  %v552 = vmax.f32 %v372, 0.0
  %v553 = vmax.f32 %v377, 0.0
  %v554 = vmax.f32 %v380, 0.0
  %v555 = vmax.f32 %v385, 0.0
  %v556 = vmax.f32 %v388, 0.0
  %v557 = vmax.f32 %v393, 0.0
  %v558 = vmax.f32 %v396, 0.0
  %v559 = vmax.f32 %v401, 0.0
  %v560 = vmax.f32 %v404, 0.0
  %v561 = vmax.f32 %v409, 0.0
  %v562 = vmax.f32 %v412, 0.0
  %v563 = vmax.f32 %v417, 0.0
  %v564 = vmax.f32 %v420, 0.0
  %v565 = vmax.f32 %v425, 0.0
  %v566 = vmax.f32 %v428, 0.0
  %v567 = vmax.f32 %v433, 0.0
  %v568 = vmax.f32 %v436, 0.0
  %v569 = vmax.f32 %v441, 0.0
  %v570 = vmax.f32 %v444, 0.0
  %v571 = vmax.f32 %v449, 0.0
  %v572 = vmax.f32 %v452, 0.0
  %v573 = vmax.f32 %v457, 0.0
  %v574 = vmax.f32 %v460, 0.0
  %v575 = vmax.f32 %v465, 0.0
  %v576 = vmax.f32 %v468, 0.0
  %v577 = vmax.f32 %v473, 0.0
  %v578 = vmax.f32 %v476, 0.0
  %v579 = vmax.f32 %v481, 0.0
  %v580 = vmax.f32 %v484, 0.0
  %v581 = vmax.f32 %v489, 0.0
  %v582 = vmax.f32 %v492, 0.0
  %v583 = vmax.f32 %v497, 0.0
  %v584 = vmax.f32 %v500, 0.0
  %v585 = vmax.f32 %v505, 0.0
  %v586 = vmax.f32 %v508, 0.0
  %v587 = vmax.f32 %v513, 0.0
  %v588 = vmax.f32 %v516, 0.0
  %v589 = vmax.f32 %v521, 0.0
  %v590 = vmax.f32 %v524, 0.0
  %v591 = vpack.c.bf16 %v528, %v527
  %v592 = vpack.c.bf16 %v530, %v529
  %v593 = vpack.c.bf16 %v532, %v531
  %v594 = vpack.c.bf16 %v534, %v533
  %v595 = vpack.c.bf16 %v536, %v535
  %v596 = vpack.c.bf16 %v538, %v537
  %v597 = vpack.c.bf16 %v540, %v539
  %v598 = vpack.c.bf16 %v542, %v541
  %v599 = vpack.c.bf16 %v544, %v543
  %v600 = vpack.c.bf16 %v546, %v545
  %v601 = vpack.c.bf16 %v548, %v547
  %v602 = vpack.c.bf16 %v550, %v549
  %v603 = vpack.c.bf16 %v552, %v551
  %v604 = vpack.c.bf16 %v554, %v553
  %v605 = vpack.c.bf16 %v556, %v555
  %v606 = vpack.c.bf16 %v558, %v557
  %v607 = vpack.c.bf16 %v560, %v559
  %v608 = vpack.c.bf16 %v562, %v561
  %v609 = vpack.c.bf16 %v564, %v563
  %v610 = vpack.c.bf16 %v566, %v565
  %v611 = vpack.c.bf16 %v568, %v567
  %v612 = vpack.c.bf16 %v570, %v569
  %v613 = vpack.c.bf16 %v572, %v571
  %v614 = vpack.c.bf16 %v574, %v573
  %v615 = vpack.c.bf16 %v576, %v575
  %v616 = vpack.c.bf16 %v578, %v577
  %v617 = vpack.c.bf16 %v580, %v579
  %v618 = vpack.c.bf16 %v582, %v581
  %v619 = vpack.c.bf16 %v584, %v583
  %v620 = vpack.c.bf16 %v586, %v585
  %v621 = vpack.c.bf16 %v588, %v587
  %v622 = vpack.c.bf16 %v590, %v589
  %v623 = vld [vmem:[%s3] sm:$0xf]
  %v624 = vld [vmem:[%s3 + $0x4] sm:$0xf]
  %v625 = vld [vmem:[%s3 + $0x8] sm:$0xf]
  %v626 = vld [vmem:[%s3 + $0xc] sm:$0xf]
  %v627 = vld [vmem:[%s3 + $0x10] sm:$0xf]
  %v628 = vld [vmem:[%s3 + $0x14] sm:$0xf]
  %v629 = vld [vmem:[%s3 + $0x18] sm:$0xf]
  %v630 = vld [vmem:[%s3 + $0x1c] sm:$0xf]
  %v631 = vld [vmem:[%s3 + $0x20] sm:$0xf]
  %v632 = vld [vmem:[%s3 + $0x24] sm:$0xf]
  %v633 = vld [vmem:[%s3 + $0x28] sm:$0xf]
  %v634 = vld [vmem:[%s3 + $0x2c] sm:$0xf]
  %v635 = vld [vmem:[%s3 + $0x30] sm:$0xf]
  %v636 = vld [vmem:[%s3 + $0x34] sm:$0xf]
  %v637 = vld [vmem:[%s3 + $0x38] sm:$0xf]
  %v638 = vld [vmem:[%s3 + $0x3c] sm:$0xf]
  %v639 = vld [vmem:[%s4] sm:$0x1]
  %v641 = vlaneseq
  %v642 = vshrl.u32 %v641, 7
  %v643 = vsub.s32 0, %v642
  %v644 = vrot.slane %v639, %v643
  %v662 = vunpack.c.l.b16 %v623
  %v663 = vunpack.c.l.b16 %v624
  %v664 = vunpack.c.l.b16 %v625
  %v665 = vunpack.c.l.b16 %v626
  %v666 = vunpack.c.l.b16 %v627
  %v667 = vunpack.c.l.b16 %v628
  %v668 = vunpack.c.l.b16 %v629
  %v669 = vunpack.c.l.b16 %v630
  %v670 = vunpack.c.l.b16 %v631
  %v671 = vunpack.c.l.b16 %v632
  %v672 = vunpack.c.l.b16 %v633
  %v673 = vunpack.c.l.b16 %v634
  %v674 = vunpack.c.l.b16 %v635
  %v675 = vunpack.c.l.b16 %v636
  %v676 = vunpack.c.l.b16 %v637
  %v677 = vunpack.c.l.b16 %v638
  %v678 = vpack.c.b16 %v663, %v662
  %v679 = vpack.c.b16 %v665, %v664
  %v680 = vpack.c.b16 %v667, %v666
  %v681 = vpack.c.b16 %v669, %v668
  %v682 = vpack.c.b16 %v671, %v670
  %v683 = vpack.c.b16 %v673, %v672
  %v684 = vpack.c.b16 %v675, %v674
  %v685 = vpack.c.b16 %v677, %v676
  %694 = vmatprep.subr.bf16.mxu0 0
  %695 = vmatpush1.bf16.msra.mxu0 %v678
  %696 = vmatprep.subr.bf16.mxu0 0
  %697 = vmatpush1.bf16.msra.mxu0 %v679
  %698 = vmatprep.subr.bf16.mxu0 0
  %699 = vmatpush1.bf16.msra.mxu0 %v680
  %700 = vmatprep.subr.bf16.mxu0 0
  %701 = vmatpush1.bf16.msra.mxu0 %v681
  %702 = vmatprep.subr.bf16.mxu0 0
  %703 = vmatpush1.bf16.msra.mxu0 %v682
  %704 = vmatprep.subr.bf16.mxu0 0
  %705 = vmatpush1.bf16.msra.mxu0 %v683
  %706 = vmatprep.subr.bf16.mxu0 0
  %707 = vmatpush1.bf16.msra.mxu0 %v684
  %708 = vmatprep.subr.bf16.mxu0 0
  %709 = vmatpush1.bf16.msra.mxu0 %v685
  %710 = vmatprep.subr.bf16.mxu0 0
  %711 = vmatpush1.bf16.msra.mxu0 0
  %712 = vmatprep.subr.bf16.mxu0 0
  %713 = vmatpush1.bf16.msra.mxu0 0
  %714 = vmatprep.subr.bf16.mxu0 0
  %715 = vmatpush1.bf16.msra.mxu0 0
  %716 = vmatprep.subr.bf16.mxu0 0
  %717 = vmatpush1.bf16.msra.mxu0 0
  %718 = vmatprep.subr.bf16.mxu0 0
  %719 = vmatpush1.bf16.msra.mxu0 0
  %720 = vmatprep.subr.bf16.mxu0 0
  %721 = vmatpush1.bf16.msra.mxu0 0
  %722 = vmatprep.subr.bf16.mxu0 0
  %723 = vmatpush1.bf16.msra.mxu0 0
  %724 = vmatprep.subr.bf16.mxu0 0
  %725 = vmatpush1.bf16.msra.mxu0 0
  %726 = vmatprep.mubr.bf16.mxu0 0
  %727 = vmatmul.mubr.bf16.gmra.mrb[0].mxu0 %v591
  %v728 = vpop.f32.mrb[0].mxu0
  %v729 = vadd.f32 %v644, %v728
  %v730 = vpop.f32.mrb[0].mxu0
  %v731 = vpop.f32.mrb[0].mxu0
  %v732 = vadd.f32 %v644, %v731
  %v733 = vpop.f32.mrb[0].mxu0
  %734 = vmatprep.mubr.bf16.mxu0 0
  %735 = vmatmul.mubr.bf16.gmra.mrb[0].mxu0 %v592
  %v736 = vpop.f32.mrb[0].mxu0
  %v737 = vadd.f32 %v644, %v736
  %v738 = vpop.f32.mrb[0].mxu0
  %v739 = vpop.f32.mrb[0].mxu0
  %v740 = vadd.f32 %v644, %v739
  %v741 = vpop.f32.mrb[0].mxu0
  %742 = vmatprep.mubr.bf16.mxu0 0
  %743 = vmatmul.mubr.bf16.gmra.mrb[0].mxu0 %v593
  %v744 = vpop.f32.mrb[0].mxu0
  %v745 = vadd.f32 %v644, %v744
  %v746 = vpop.f32.mrb[0].mxu0
  %v747 = vpop.f32.mrb[0].mxu0
  %v748 = vadd.f32 %v644, %v747
  %v749 = vpop.f32.mrb[0].mxu0
  %750 = vmatprep.mubr.bf16.mxu0 0
  %751 = vmatmul.mubr.bf16.gmra.mrb[0].mxu0 %v594
  %v752 = vpop.f32.mrb[0].mxu0
  %v753 = vadd.f32 %v644, %v752
  %v754 = vpop.f32.mrb[0].mxu0
  %v755 = vpop.f32.mrb[0].mxu0
  %v756 = vadd.f32 %v644, %v755
  %v757 = vpop.f32.mrb[0].mxu0
  %758 = vmatprep.mubr.bf16.mxu0 0
  %759 = vmatmul.mubr.bf16.gmra.mrb[0].mxu0 %v595
  %v760 = vpop.f32.mrb[0].mxu0
  %v761 = vadd.f32 %v644, %v760
  %v762 = vpop.f32.mrb[0].mxu0
  %v763 = vpop.f32.mrb[0].mxu0
  %v764 = vadd.f32 %v644, %v763
  %v765 = vpop.f32.mrb[0].mxu0
  %766 = vmatprep.mubr.bf16.mxu0 0
  %767 = vmatmul.mubr.bf16.gmra.mrb[0].mxu0 %v596
  %v768 = vpop.f32.mrb[0].mxu0
  %v769 = vadd.f32 %v644, %v768
  %v770 = vpop.f32.mrb[0].mxu0
  %v771 = vpop.f32.mrb[0].mxu0
  %v772 = vadd.f32 %v644, %v771
  %v773 = vpop.f32.mrb[0].mxu0
  %774 = vmatprep.mubr.bf16.mxu0 0
  %775 = vmatmul.mubr.bf16.gmra.mrb[0].mxu0 %v597
  %v776 = vpop.f32.mrb[0].mxu0
  %v777 = vadd.f32 %v644, %v776
  %v778 = vpop.f32.mrb[0].mxu0
  %v779 = vpop.f32.mrb[0].mxu0
  %v780 = vadd.f32 %v644, %v779
  %v781 = vpop.f32.mrb[0].mxu0
  %782 = vmatprep.mubr.bf16.mxu0 0
  %783 = vmatmul.mubr.bf16.gmra.mrb[0].mxu0 %v598
  %v784 = vpop.f32.mrb[0].mxu0
  %v785 = vadd.f32 %v644, %v784
  %v786 = vpop.f32.mrb[0].mxu0
  %v787 = vpop.f32.mrb[0].mxu0
  %v788 = vadd.f32 %v644, %v787
  %v789 = vpop.f32.mrb[0].mxu0
  %790 = vmatprep.mubr.bf16.mxu0 0
  %791 = vmatmul.mubr.bf16.gmra.mrb[0].mxu0 %v599
  %v792 = vpop.f32.mrb[0].mxu0
  %v793 = vadd.f32 %v644, %v792
  %v794 = vpop.f32.mrb[0].mxu0
  %v795 = vpop.f32.mrb[0].mxu0
  %v796 = vadd.f32 %v644, %v795
  %v797 = vpop.f32.mrb[0].mxu0
  %798 = vmatprep.mubr.bf16.mxu0 0
  %799 = vmatmul.mubr.bf16.gmra.mrb[0].mxu0 %v600
  %v800 = vpop.f32.mrb[0].mxu0
  %v801 = vadd.f32 %v644, %v800
  %v802 = vpop.f32.mrb[0].mxu0
  %v803 = vpop.f32.mrb[0].mxu0
  %v804 = vadd.f32 %v644, %v803
  %v805 = vpop.f32.mrb[0].mxu0
  %806 = vmatprep.mubr.bf16.mxu0 0
  %807 = vmatmul.mubr.bf16.gmra.mrb[0].mxu0 %v601
  %v808 = vpop.f32.mrb[0].mxu0
  %v809 = vadd.f32 %v644, %v808
  %v810 = vpop.f32.mrb[0].mxu0
  %v811 = vpop.f32.mrb[0].mxu0
  %v812 = vadd.f32 %v644, %v811
  %v813 = vpop.f32.mrb[0].mxu0
  %814 = vmatprep.mubr.bf16.mxu0 0
  %815 = vmatmul.mubr.bf16.gmra.mrb[0].mxu0 %v602
  %v816 = vpop.f32.mrb[0].mxu0
  %v817 = vadd.f32 %v644, %v816
  %v818 = vpop.f32.mrb[0].mxu0
  %v819 = vpop.f32.mrb[0].mxu0
  %v820 = vadd.f32 %v644, %v819
  %v821 = vpop.f32.mrb[0].mxu0
  %822 = vmatprep.mubr.bf16.mxu0 0
  %823 = vmatmul.mubr.bf16.gmra.mrb[0].mxu0 %v603
  %v824 = vpop.f32.mrb[0].mxu0
  %v825 = vadd.f32 %v644, %v824
  %v826 = vpop.f32.mrb[0].mxu0
  %v827 = vpop.f32.mrb[0].mxu0
  %v828 = vadd.f32 %v644, %v827
  %v829 = vpop.f32.mrb[0].mxu0
  %830 = vmatprep.mubr.bf16.mxu0 0
  %831 = vmatmul.mubr.bf16.gmra.mrb[0].mxu0 %v604
  %v832 = vpop.f32.mrb[0].mxu0
  %v833 = vadd.f32 %v644, %v832
  %v834 = vpop.f32.mrb[0].mxu0
  %v835 = vpop.f32.mrb[0].mxu0
  %v836 = vadd.f32 %v644, %v835
  %v837 = vpop.f32.mrb[0].mxu0
  %838 = vmatprep.mubr.bf16.mxu0 0
  %839 = vmatmul.mubr.bf16.gmra.mrb[0].mxu0 %v605
  %v840 = vpop.f32.mrb[0].mxu0
  %v841 = vadd.f32 %v644, %v840
  %v842 = vpop.f32.mrb[0].mxu0
  %v843 = vpop.f32.mrb[0].mxu0
  %v844 = vadd.f32 %v644, %v843
  %v845 = vpop.f32.mrb[0].mxu0
  %846 = vmatprep.mubr.bf16.mxu0 0
  %847 = vmatmul.mubr.bf16.gmra.mrb[0].mxu0 %v606
  %v848 = vpop.f32.mrb[0].mxu0
  %v849 = vadd.f32 %v644, %v848
  %v850 = vpop.f32.mrb[0].mxu0
  %v851 = vpop.f32.mrb[0].mxu0
  %v852 = vadd.f32 %v644, %v851
  %v853 = vpop.f32.mrb[0].mxu0
  %854 = vmatprep.mubr.bf16.mxu0 0
  %855 = vmatmul.mubr.bf16.gmra.mrb[0].mxu0 %v607
  %v856 = vpop.f32.mrb[0].mxu0
  %v857 = vadd.f32 %v644, %v856
  %v858 = vpop.f32.mrb[0].mxu0
  %v859 = vpop.f32.mrb[0].mxu0
  %v860 = vadd.f32 %v644, %v859
  %v861 = vpop.f32.mrb[0].mxu0
  %862 = vmatprep.mubr.bf16.mxu0 0
  %863 = vmatmul.mubr.bf16.gmra.mrb[0].mxu0 %v608
  %v864 = vpop.f32.mrb[0].mxu0
  %v865 = vadd.f32 %v644, %v864
  %v866 = vpop.f32.mrb[0].mxu0
  %v867 = vpop.f32.mrb[0].mxu0
  %v868 = vadd.f32 %v644, %v867
  %v869 = vpop.f32.mrb[0].mxu0
  %870 = vmatprep.mubr.bf16.mxu0 0
  %871 = vmatmul.mubr.bf16.gmra.mrb[0].mxu0 %v609
  %v872 = vpop.f32.mrb[0].mxu0
  %v873 = vadd.f32 %v644, %v872
  %v874 = vpop.f32.mrb[0].mxu0
  %v875 = vpop.f32.mrb[0].mxu0
  %v876 = vadd.f32 %v644, %v875
  %v877 = vpop.f32.mrb[0].mxu0
  %878 = vmatprep.mubr.bf16.mxu0 0
  %879 = vmatmul.mubr.bf16.gmra.mrb[0].mxu0 %v610
  %v880 = vpop.f32.mrb[0].mxu0
  %v881 = vadd.f32 %v644, %v880
  %v882 = vpop.f32.mrb[0].mxu0
  %v883 = vpop.f32.mrb[0].mxu0
  %v884 = vadd.f32 %v644, %v883
  %v885 = vpop.f32.mrb[0].mxu0
  %886 = vmatprep.mubr.bf16.mxu0 0
  %887 = vmatmul.mubr.bf16.gmra.mrb[0].mxu0 %v611
  %v888 = vpop.f32.mrb[0].mxu0
  %v889 = vadd.f32 %v644, %v888
  %v890 = vpop.f32.mrb[0].mxu0
  %v891 = vpop.f32.mrb[0].mxu0
  %v892 = vadd.f32 %v644, %v891
  %v893 = vpop.f32.mrb[0].mxu0
  %894 = vmatprep.mubr.bf16.mxu0 0
  %895 = vmatmul.mubr.bf16.gmra.mrb[0].mxu0 %v612
  %v896 = vpop.f32.mrb[0].mxu0
  %v897 = vadd.f32 %v644, %v896
  %v898 = vpop.f32.mrb[0].mxu0
  %v899 = vpop.f32.mrb[0].mxu0
  %v900 = vadd.f32 %v644, %v899
  %v901 = vpop.f32.mrb[0].mxu0
  %902 = vmatprep.mubr.bf16.mxu0 0
  %903 = vmatmul.mubr.bf16.gmra.mrb[0].mxu0 %v613
  %v904 = vpop.f32.mrb[0].mxu0
  %v905 = vadd.f32 %v644, %v904
  %v906 = vpop.f32.mrb[0].mxu0
  %v907 = vpop.f32.mrb[0].mxu0
  %v908 = vadd.f32 %v644, %v907
  %v909 = vpop.f32.mrb[0].mxu0
  %910 = vmatprep.mubr.bf16.mxu0 0
  %911 = vmatmul.mubr.bf16.gmra.mrb[0].mxu0 %v614
  %v912 = vpop.f32.mrb[0].mxu0
  %v913 = vadd.f32 %v644, %v912
  %v914 = vpop.f32.mrb[0].mxu0
  %v915 = vpop.f32.mrb[0].mxu0
  %v916 = vadd.f32 %v644, %v915
  %v917 = vpop.f32.mrb[0].mxu0
  %918 = vmatprep.mubr.bf16.mxu0 0
  %919 = vmatmul.mubr.bf16.gmra.mrb[0].mxu0 %v615
  %v920 = vpop.f32.mrb[0].mxu0
  %v921 = vadd.f32 %v644, %v920
  %v922 = vpop.f32.mrb[0].mxu0
  %v923 = vpop.f32.mrb[0].mxu0
  %v924 = vadd.f32 %v644, %v923
  %v925 = vpop.f32.mrb[0].mxu0
  %926 = vmatprep.mubr.bf16.mxu0 0
  %927 = vmatmul.mubr.bf16.gmra.mrb[0].mxu0 %v616
  %v928 = vpop.f32.mrb[0].mxu0
  %v929 = vadd.f32 %v644, %v928
  %v930 = vpop.f32.mrb[0].mxu0
  %v931 = vpop.f32.mrb[0].mxu0
  %v932 = vadd.f32 %v644, %v931
  %v933 = vpop.f32.mrb[0].mxu0
  %934 = vmatprep.mubr.bf16.mxu0 0
  %935 = vmatmul.mubr.bf16.gmra.mrb[0].mxu0 %v617
  %v936 = vpop.f32.mrb[0].mxu0
  %v937 = vadd.f32 %v644, %v936
  %v938 = vpop.f32.mrb[0].mxu0
  %v939 = vpop.f32.mrb[0].mxu0
  %v940 = vadd.f32 %v644, %v939
  %v941 = vpop.f32.mrb[0].mxu0
  %942 = vmatprep.mubr.bf16.mxu0 0
  %943 = vmatmul.mubr.bf16.gmra.mrb[0].mxu0 %v618
  %v944 = vpop.f32.mrb[0].mxu0
  %v945 = vadd.f32 %v644, %v944
  %v946 = vpop.f32.mrb[0].mxu0
  %v947 = vpop.f32.mrb[0].mxu0
  %v948 = vadd.f32 %v644, %v947
  %v949 = vpop.f32.mrb[0].mxu0
  %950 = vmatprep.mubr.bf16.mxu0 0
  %951 = vmatmul.mubr.bf16.gmra.mrb[0].mxu0 %v619
  %v952 = vpop.f32.mrb[0].mxu0
  %v953 = vadd.f32 %v644, %v952
  %v954 = vpop.f32.mrb[0].mxu0
  %v955 = vpop.f32.mrb[0].mxu0
  %v956 = vadd.f32 %v644, %v955
  %v957 = vpop.f32.mrb[0].mxu0
  %958 = vmatprep.mubr.bf16.mxu0 0
  %959 = vmatmul.mubr.bf16.gmra.mrb[0].mxu0 %v620
  %v960 = vpop.f32.mrb[0].mxu0
  %v961 = vadd.f32 %v644, %v960
  %v962 = vpop.f32.mrb[0].mxu0
  %v963 = vpop.f32.mrb[0].mxu0
  %v964 = vadd.f32 %v644, %v963
  %v965 = vpop.f32.mrb[0].mxu0
  %966 = vmatprep.mubr.bf16.mxu0 0
  %967 = vmatmul.mubr.bf16.gmra.mrb[0].mxu0 %v621
  %v968 = vpop.f32.mrb[0].mxu0
  %v969 = vadd.f32 %v644, %v968
  %v970 = vpop.f32.mrb[0].mxu0
  %v971 = vpop.f32.mrb[0].mxu0
  %v972 = vadd.f32 %v644, %v971
  %v973 = vpop.f32.mrb[0].mxu0
  %974 = vmatprep.mubr.bf16.mxu0 0
  %975 = vmatmul.mubr.bf16.gmra.mrb[0].mxu0 %v622
  %v976 = vpop.f32.mrb[0].mxu0
  %v977 = vadd.f32 %v644, %v976
  %v978 = vpop.f32.mrb[0].mxu0
  %v979 = vpop.f32.mrb[0].mxu0
  %v980 = vadd.f32 %v644, %v979
  %v981 = vpop.f32.mrb[0].mxu0
  %982 = vdwg.mxu0
  %v983 = vmax.f32 %v729, 0.0
  %v984 = vmax.f32 %v732, 0.0
  %v985 = vmax.f32 %v737, 0.0
  %v986 = vmax.f32 %v740, 0.0
  %v987 = vmax.f32 %v745, 0.0
  %v988 = vmax.f32 %v748, 0.0
  %v989 = vmax.f32 %v753, 0.0
  %v990 = vmax.f32 %v756, 0.0
  %v991 = vmax.f32 %v761, 0.0
  %v992 = vmax.f32 %v764, 0.0
  %v993 = vmax.f32 %v769, 0.0
  %v994 = vmax.f32 %v772, 0.0
  %v995 = vmax.f32 %v777, 0.0
  %v996 = vmax.f32 %v780, 0.0
  %v997 = vmax.f32 %v785, 0.0
  %v998 = vmax.f32 %v788, 0.0
  %v999 = vmax.f32 %v793, 0.0
  %v1000 = vmax.f32 %v796, 0.0
  %v1001 = vmax.f32 %v801, 0.0
  %v1002 = vmax.f32 %v804, 0.0
  %v1003 = vmax.f32 %v809, 0.0
  %v1004 = vmax.f32 %v812, 0.0
  %v1005 = vmax.f32 %v817, 0.0
  %v1006 = vmax.f32 %v820, 0.0
  %v1007 = vmax.f32 %v825, 0.0
  %v1008 = vmax.f32 %v828, 0.0
  %v1009 = vmax.f32 %v833, 0.0
  %v1010 = vmax.f32 %v836, 0.0
  %v1011 = vmax.f32 %v841, 0.0
  %v1012 = vmax.f32 %v844, 0.0
  %v1013 = vmax.f32 %v849, 0.0
  %v1014 = vmax.f32 %v852, 0.0
  %v1015 = vmax.f32 %v857, 0.0
  %v1016 = vmax.f32 %v860, 0.0
  %v1017 = vmax.f32 %v865, 0.0
  %v1018 = vmax.f32 %v868, 0.0
  %v1019 = vmax.f32 %v873, 0.0
  %v1020 = vmax.f32 %v876, 0.0
  %v1021 = vmax.f32 %v881, 0.0
  %v1022 = vmax.f32 %v884, 0.0
  %v1023 = vmax.f32 %v889, 0.0
  %v1024 = vmax.f32 %v892, 0.0
  %v1025 = vmax.f32 %v897, 0.0
  %v1026 = vmax.f32 %v900, 0.0
  %v1027 = vmax.f32 %v905, 0.0
  %v1028 = vmax.f32 %v908, 0.0
  %v1029 = vmax.f32 %v913, 0.0
  %v1030 = vmax.f32 %v916, 0.0
  %v1031 = vmax.f32 %v921, 0.0
  %v1032 = vmax.f32 %v924, 0.0
  %v1033 = vmax.f32 %v929, 0.0
  %v1034 = vmax.f32 %v932, 0.0
  %v1035 = vmax.f32 %v937, 0.0
  %v1036 = vmax.f32 %v940, 0.0
  %v1037 = vmax.f32 %v945, 0.0
  %v1038 = vmax.f32 %v948, 0.0
  %v1039 = vmax.f32 %v953, 0.0
  %v1040 = vmax.f32 %v956, 0.0
  %v1041 = vmax.f32 %v961, 0.0
  %v1042 = vmax.f32 %v964, 0.0
  %v1043 = vmax.f32 %v969, 0.0
  %v1044 = vmax.f32 %v972, 0.0
  %v1045 = vmax.f32 %v977, 0.0
  %v1046 = vmax.f32 %v980, 0.0
  %v1047 = vpack.c.bf16 %v984, %v983
  %v1048 = vpack.c.bf16 %v986, %v985
  %v1049 = vpack.c.bf16 %v988, %v987
  %v1050 = vpack.c.bf16 %v990, %v989
  %v1051 = vpack.c.bf16 %v992, %v991
  %v1052 = vpack.c.bf16 %v994, %v993
  %v1053 = vpack.c.bf16 %v996, %v995
  %v1054 = vpack.c.bf16 %v998, %v997
  %v1055 = vpack.c.bf16 %v1000, %v999
  %v1056 = vpack.c.bf16 %v1002, %v1001
  %v1057 = vpack.c.bf16 %v1004, %v1003
  %v1058 = vpack.c.bf16 %v1006, %v1005
  %v1059 = vpack.c.bf16 %v1008, %v1007
  %v1060 = vpack.c.bf16 %v1010, %v1009
  %v1061 = vpack.c.bf16 %v1012, %v1011
  %v1062 = vpack.c.bf16 %v1014, %v1013
  %v1063 = vpack.c.bf16 %v1016, %v1015
  %v1064 = vpack.c.bf16 %v1018, %v1017
  %v1065 = vpack.c.bf16 %v1020, %v1019
  %v1066 = vpack.c.bf16 %v1022, %v1021
  %v1067 = vpack.c.bf16 %v1024, %v1023
  %v1068 = vpack.c.bf16 %v1026, %v1025
  %v1069 = vpack.c.bf16 %v1028, %v1027
  %v1070 = vpack.c.bf16 %v1030, %v1029
  %v1071 = vpack.c.bf16 %v1032, %v1031
  %v1072 = vpack.c.bf16 %v1034, %v1033
  %v1073 = vpack.c.bf16 %v1036, %v1035
  %v1074 = vpack.c.bf16 %v1038, %v1037
  %v1075 = vpack.c.bf16 %v1040, %v1039
  %v1076 = vpack.c.bf16 %v1042, %v1041
  %v1077 = vpack.c.bf16 %v1044, %v1043
  %v1078 = vpack.c.bf16 %v1046, %v1045
  %v1079 = vld [vmem:[%s5] sm:$0xf]
  %v1080 = vld [vmem:[%s5 + $0x4] sm:$0xf]
  %v1081 = vld [vmem:[%s5 + $0x8] sm:$0xf]
  %v1082 = vld [vmem:[%s5 + $0xc] sm:$0xf]
  %v1083 = vld [vmem:[%s5 + $0x10] sm:$0xf]
  %v1084 = vld [vmem:[%s5 + $0x14] sm:$0xf]
  %v1085 = vld [vmem:[%s5 + $0x18] sm:$0xf]
  %v1086 = vld [vmem:[%s5 + $0x1c] sm:$0xf]
  %v1087 = vld [vmem:[%s5 + $0x20] sm:$0xf]
  %v1088 = vld [vmem:[%s5 + $0x24] sm:$0xf]
  %v1089 = vld [vmem:[%s5 + $0x28] sm:$0xf]
  %v1090 = vld [vmem:[%s5 + $0x2c] sm:$0xf]
  %v1091 = vld [vmem:[%s5 + $0x30] sm:$0xf]
  %v1092 = vld [vmem:[%s5 + $0x34] sm:$0xf]
  %v1093 = vld [vmem:[%s5 + $0x38] sm:$0xf]
  %v1094 = vld [vmem:[%s5 + $0x3c] sm:$0xf]
  %v1095 = vld [vmem:[%s6] sm:$0x1]
  %v1097 = vlaneseq
  %v1098 = vshrl.u32 %v1097, 7
  %v1099 = vsub.s32 0, %v1098
  %v1100 = vrot.slane %v1095, %v1099
  %v1118 = vunpack.c.l.b16 %v1079
  %v1119 = vunpack.c.l.b16 %v1080
  %v1120 = vunpack.c.l.b16 %v1081
  %v1121 = vunpack.c.l.b16 %v1082
  %v1122 = vunpack.c.l.b16 %v1083
  %v1123 = vunpack.c.l.b16 %v1084
  %v1124 = vunpack.c.l.b16 %v1085
  %v1125 = vunpack.c.l.b16 %v1086
  %v1126 = vunpack.c.l.b16 %v1087
  %v1127 = vunpack.c.l.b16 %v1088
  %v1128 = vunpack.c.l.b16 %v1089
  %v1129 = vunpack.c.l.b16 %v1090
  %v1130 = vunpack.c.l.b16 %v1091
  %v1131 = vunpack.c.l.b16 %v1092
  %v1132 = vunpack.c.l.b16 %v1093
  %v1133 = vunpack.c.l.b16 %v1094
  %v1134 = vpack.c.b16 %v1119, %v1118
  %v1135 = vpack.c.b16 %v1121, %v1120
  %v1136 = vpack.c.b16 %v1123, %v1122
  %v1137 = vpack.c.b16 %v1125, %v1124
  %v1138 = vpack.c.b16 %v1127, %v1126
  %v1139 = vpack.c.b16 %v1129, %v1128
  %v1140 = vpack.c.b16 %v1131, %v1130
  %v1141 = vpack.c.b16 %v1133, %v1132
  %1150 = vmatprep.subr.bf16.mxu0 0
  %1151 = vmatpush1.bf16.msra.mxu0 %v1134
  %1152 = vmatprep.subr.bf16.mxu0 0
  %1153 = vmatpush1.bf16.msra.mxu0 %v1135
  %1154 = vmatprep.subr.bf16.mxu0 0
  %1155 = vmatpush1.bf16.msra.mxu0 %v1136
  %1156 = vmatprep.subr.bf16.mxu0 0
  %1157 = vmatpush1.bf16.msra.mxu0 %v1137
  %1158 = vmatprep.subr.bf16.mxu0 0
  %1159 = vmatpush1.bf16.msra.mxu0 %v1138
  %1160 = vmatprep.subr.bf16.mxu0 0
  %1161 = vmatpush1.bf16.msra.mxu0 %v1139
  %1162 = vmatprep.subr.bf16.mxu0 0
  %1163 = vmatpush1.bf16.msra.mxu0 %v1140
  %1164 = vmatprep.subr.bf16.mxu0 0
  %1165 = vmatpush1.bf16.msra.mxu0 %v1141
  %1166 = vmatprep.subr.bf16.mxu0 0
  %1167 = vmatpush1.bf16.msra.mxu0 0
  %1168 = vmatprep.subr.bf16.mxu0 0
  %1169 = vmatpush1.bf16.msra.mxu0 0
  %1170 = vmatprep.subr.bf16.mxu0 0
  %1171 = vmatpush1.bf16.msra.mxu0 0
  %1172 = vmatprep.subr.bf16.mxu0 0
  %1173 = vmatpush1.bf16.msra.mxu0 0
  %1174 = vmatprep.subr.bf16.mxu0 0
  %1175 = vmatpush1.bf16.msra.mxu0 0
  %1176 = vmatprep.subr.bf16.mxu0 0
  %1177 = vmatpush1.bf16.msra.mxu0 0
  %1178 = vmatprep.subr.bf16.mxu0 0
  %1179 = vmatpush1.bf16.msra.mxu0 0
  %1180 = vmatprep.subr.bf16.mxu0 0
  %1181 = vmatpush1.bf16.msra.mxu0 0
  %1182 = vmatprep.mubr.bf16.mxu0 0
  %1183 = vmatmul.mubr.bf16.gmra.mrb[0].mxu0 %v1047
  %v1184 = vpop.f32.mrb[0].mxu0
  %v1185 = vadd.f32 %v1100, %v1184
  %v1186 = vpop.f32.mrb[0].mxu0
  %v1187 = vpop.f32.mrb[0].mxu0
  %v1188 = vadd.f32 %v1100, %v1187
  %v1189 = vpop.f32.mrb[0].mxu0
  %1190 = vmatprep.mubr.bf16.mxu0 0
  %1191 = vmatmul.mubr.bf16.gmra.mrb[0].mxu0 %v1048
  %v1192 = vpop.f32.mrb[0].mxu0
  %v1193 = vadd.f32 %v1100, %v1192
  %v1194 = vpop.f32.mrb[0].mxu0
  %v1195 = vpop.f32.mrb[0].mxu0
  %v1196 = vadd.f32 %v1100, %v1195
  %v1197 = vpop.f32.mrb[0].mxu0
  %1198 = vmatprep.mubr.bf16.mxu0 0
  %1199 = vmatmul.mubr.bf16.gmra.mrb[0].mxu0 %v1049
  %v1200 = vpop.f32.mrb[0].mxu0
  %v1201 = vadd.f32 %v1100, %v1200
  %v1202 = vpop.f32.mrb[0].mxu0
  %v1203 = vpop.f32.mrb[0].mxu0
  %v1204 = vadd.f32 %v1100, %v1203
  %v1205 = vpop.f32.mrb[0].mxu0
  %1206 = vmatprep.mubr.bf16.mxu0 0
  %1207 = vmatmul.mubr.bf16.gmra.mrb[0].mxu0 %v1050
  %v1208 = vpop.f32.mrb[0].mxu0
  %v1209 = vadd.f32 %v1100, %v1208
  %v1210 = vpop.f32.mrb[0].mxu0
  %v1211 = vpop.f32.mrb[0].mxu0
  %v1212 = vadd.f32 %v1100, %v1211
  %v1213 = vpop.f32.mrb[0].mxu0
  %1214 = vmatprep.mubr.bf16.mxu0 0
  %1215 = vmatmul.mubr.bf16.gmra.mrb[0].mxu0 %v1051
  %v1216 = vpop.f32.mrb[0].mxu0
  %v1217 = vadd.f32 %v1100, %v1216
  %v1218 = vpop.f32.mrb[0].mxu0
  %v1219 = vpop.f32.mrb[0].mxu0
  %v1220 = vadd.f32 %v1100, %v1219
  %v1221 = vpop.f32.mrb[0].mxu0
  %1222 = vmatprep.mubr.bf16.mxu0 0
  %1223 = vmatmul.mubr.bf16.gmra.mrb[0].mxu0 %v1052
  %v1224 = vpop.f32.mrb[0].mxu0
  %v1225 = vadd.f32 %v1100, %v1224
  %v1226 = vpop.f32.mrb[0].mxu0
  %v1227 = vpop.f32.mrb[0].mxu0
  %v1228 = vadd.f32 %v1100, %v1227
  %v1229 = vpop.f32.mrb[0].mxu0
  %1230 = vmatprep.mubr.bf16.mxu0 0
  %1231 = vmatmul.mubr.bf16.gmra.mrb[0].mxu0 %v1053
  %v1232 = vpop.f32.mrb[0].mxu0
  %v1233 = vadd.f32 %v1100, %v1232
  %v1234 = vpop.f32.mrb[0].mxu0
  %v1235 = vpop.f32.mrb[0].mxu0
  %v1236 = vadd.f32 %v1100, %v1235
  %v1237 = vpop.f32.mrb[0].mxu0
  %1238 = vmatprep.mubr.bf16.mxu0 0
  %1239 = vmatmul.mubr.bf16.gmra.mrb[0].mxu0 %v1054
  %v1240 = vpop.f32.mrb[0].mxu0
  %v1241 = vadd.f32 %v1100, %v1240
  %v1242 = vpop.f32.mrb[0].mxu0
  %v1243 = vpop.f32.mrb[0].mxu0
  %v1244 = vadd.f32 %v1100, %v1243
  %v1245 = vpop.f32.mrb[0].mxu0
  %1246 = vmatprep.mubr.bf16.mxu0 0
  %1247 = vmatmul.mubr.bf16.gmra.mrb[0].mxu0 %v1055
  %v1248 = vpop.f32.mrb[0].mxu0
  %v1249 = vadd.f32 %v1100, %v1248
  %v1250 = vpop.f32.mrb[0].mxu0
  %v1251 = vpop.f32.mrb[0].mxu0
  %v1252 = vadd.f32 %v1100, %v1251
  %v1253 = vpop.f32.mrb[0].mxu0
  %1254 = vmatprep.mubr.bf16.mxu0 0
  %1255 = vmatmul.mubr.bf16.gmra.mrb[0].mxu0 %v1056
  %v1256 = vpop.f32.mrb[0].mxu0
  %v1257 = vadd.f32 %v1100, %v1256
  %v1258 = vpop.f32.mrb[0].mxu0
  %v1259 = vpop.f32.mrb[0].mxu0
  %v1260 = vadd.f32 %v1100, %v1259
  %v1261 = vpop.f32.mrb[0].mxu0
  %1262 = vmatprep.mubr.bf16.mxu0 0
  %1263 = vmatmul.mubr.bf16.gmra.mrb[0].mxu0 %v1057
  %v1264 = vpop.f32.mrb[0].mxu0
  %v1265 = vadd.f32 %v1100, %v1264
  %v1266 = vpop.f32.mrb[0].mxu0
  %v1267 = vpop.f32.mrb[0].mxu0
  %v1268 = vadd.f32 %v1100, %v1267
  %v1269 = vpop.f32.mrb[0].mxu0
  %1270 = vmatprep.mubr.bf16.mxu0 0
  %1271 = vmatmul.mubr.bf16.gmra.mrb[0].mxu0 %v1058
  %v1272 = vpop.f32.mrb[0].mxu0
  %v1273 = vadd.f32 %v1100, %v1272
  %v1274 = vpop.f32.mrb[0].mxu0
  %v1275 = vpop.f32.mrb[0].mxu0
  %v1276 = vadd.f32 %v1100, %v1275
  %v1277 = vpop.f32.mrb[0].mxu0
  %1278 = vmatprep.mubr.bf16.mxu0 0
  %1279 = vmatmul.mubr.bf16.gmra.mrb[0].mxu0 %v1059
  %v1280 = vpop.f32.mrb[0].mxu0
  %v1281 = vadd.f32 %v1100, %v1280
  %v1282 = vpop.f32.mrb[0].mxu0
  %v1283 = vpop.f32.mrb[0].mxu0
  %v1284 = vadd.f32 %v1100, %v1283
  %v1285 = vpop.f32.mrb[0].mxu0
  %1286 = vmatprep.mubr.bf16.mxu0 0
  %1287 = vmatmul.mubr.bf16.gmra.mrb[0].mxu0 %v1060
  %v1288 = vpop.f32.mrb[0].mxu0
  %v1289 = vadd.f32 %v1100, %v1288
  %v1290 = vpop.f32.mrb[0].mxu0
  %v1291 = vpop.f32.mrb[0].mxu0
  %v1292 = vadd.f32 %v1100, %v1291
  %v1293 = vpop.f32.mrb[0].mxu0
  %1294 = vmatprep.mubr.bf16.mxu0 0
  %1295 = vmatmul.mubr.bf16.gmra.mrb[0].mxu0 %v1061
  %v1296 = vpop.f32.mrb[0].mxu0
  %v1297 = vadd.f32 %v1100, %v1296
  %v1298 = vpop.f32.mrb[0].mxu0
  %v1299 = vpop.f32.mrb[0].mxu0
  %v1300 = vadd.f32 %v1100, %v1299
  %v1301 = vpop.f32.mrb[0].mxu0
  %1302 = vmatprep.mubr.bf16.mxu0 0
  %1303 = vmatmul.mubr.bf16.gmra.mrb[0].mxu0 %v1062
  %v1304 = vpop.f32.mrb[0].mxu0
  %v1305 = vadd.f32 %v1100, %v1304
  %v1306 = vpop.f32.mrb[0].mxu0
  %v1307 = vpop.f32.mrb[0].mxu0
  %v1308 = vadd.f32 %v1100, %v1307
  %v1309 = vpop.f32.mrb[0].mxu0
  %1310 = vmatprep.mubr.bf16.mxu0 0
  %1311 = vmatmul.mubr.bf16.gmra.mrb[0].mxu0 %v1063
  %v1312 = vpop.f32.mrb[0].mxu0
  %v1313 = vadd.f32 %v1100, %v1312
  %v1314 = vpop.f32.mrb[0].mxu0
  %v1315 = vpop.f32.mrb[0].mxu0
  %v1316 = vadd.f32 %v1100, %v1315
  %v1317 = vpop.f32.mrb[0].mxu0
  %1318 = vmatprep.mubr.bf16.mxu0 0
  %1319 = vmatmul.mubr.bf16.gmra.mrb[0].mxu0 %v1064
  %v1320 = vpop.f32.mrb[0].mxu0
  %v1321 = vadd.f32 %v1100, %v1320
  %v1322 = vpop.f32.mrb[0].mxu0
  %v1323 = vpop.f32.mrb[0].mxu0
  %v1324 = vadd.f32 %v1100, %v1323
  %v1325 = vpop.f32.mrb[0].mxu0
  %1326 = vmatprep.mubr.bf16.mxu0 0
  %1327 = vmatmul.mubr.bf16.gmra.mrb[0].mxu0 %v1065
  %v1328 = vpop.f32.mrb[0].mxu0
  %v1329 = vadd.f32 %v1100, %v1328
  %v1330 = vpop.f32.mrb[0].mxu0
  %v1331 = vpop.f32.mrb[0].mxu0
  %v1332 = vadd.f32 %v1100, %v1331
  %v1333 = vpop.f32.mrb[0].mxu0
  %1334 = vmatprep.mubr.bf16.mxu0 0
  %1335 = vmatmul.mubr.bf16.gmra.mrb[0].mxu0 %v1066
  %v1336 = vpop.f32.mrb[0].mxu0
  %v1337 = vadd.f32 %v1100, %v1336
  %v1338 = vpop.f32.mrb[0].mxu0
  %v1339 = vpop.f32.mrb[0].mxu0
  %v1340 = vadd.f32 %v1100, %v1339
  %v1341 = vpop.f32.mrb[0].mxu0
  %1342 = vmatprep.mubr.bf16.mxu0 0
  %1343 = vmatmul.mubr.bf16.gmra.mrb[0].mxu0 %v1067
  %v1344 = vpop.f32.mrb[0].mxu0
  %v1345 = vadd.f32 %v1100, %v1344
  %v1346 = vpop.f32.mrb[0].mxu0
  %v1347 = vpop.f32.mrb[0].mxu0
  %v1348 = vadd.f32 %v1100, %v1347
  %v1349 = vpop.f32.mrb[0].mxu0
  %1350 = vmatprep.mubr.bf16.mxu0 0
  %1351 = vmatmul.mubr.bf16.gmra.mrb[0].mxu0 %v1068
  %v1352 = vpop.f32.mrb[0].mxu0
  %v1353 = vadd.f32 %v1100, %v1352
  %v1354 = vpop.f32.mrb[0].mxu0
  %v1355 = vpop.f32.mrb[0].mxu0
  %v1356 = vadd.f32 %v1100, %v1355
  %v1357 = vpop.f32.mrb[0].mxu0
  %1358 = vmatprep.mubr.bf16.mxu0 0
  %1359 = vmatmul.mubr.bf16.gmra.mrb[0].mxu0 %v1069
  %v1360 = vpop.f32.mrb[0].mxu0
  %v1361 = vadd.f32 %v1100, %v1360
  %v1362 = vpop.f32.mrb[0].mxu0
  %v1363 = vpop.f32.mrb[0].mxu0
  %v1364 = vadd.f32 %v1100, %v1363
  %v1365 = vpop.f32.mrb[0].mxu0
  %1366 = vmatprep.mubr.bf16.mxu0 0
  %1367 = vmatmul.mubr.bf16.gmra.mrb[0].mxu0 %v1070
  %v1368 = vpop.f32.mrb[0].mxu0
  %v1369 = vadd.f32 %v1100, %v1368
  %v1370 = vpop.f32.mrb[0].mxu0
  %v1371 = vpop.f32.mrb[0].mxu0
  %v1372 = vadd.f32 %v1100, %v1371
  %v1373 = vpop.f32.mrb[0].mxu0
  %1374 = vmatprep.mubr.bf16.mxu0 0
  %1375 = vmatmul.mubr.bf16.gmra.mrb[0].mxu0 %v1071
  %v1376 = vpop.f32.mrb[0].mxu0
  %v1377 = vadd.f32 %v1100, %v1376
  %v1378 = vpop.f32.mrb[0].mxu0
  %v1379 = vpop.f32.mrb[0].mxu0
  %v1380 = vadd.f32 %v1100, %v1379
  %v1381 = vpop.f32.mrb[0].mxu0
  %1382 = vmatprep.mubr.bf16.mxu0 0
  %1383 = vmatmul.mubr.bf16.gmra.mrb[0].mxu0 %v1072
  %v1384 = vpop.f32.mrb[0].mxu0
  %v1385 = vadd.f32 %v1100, %v1384
  %v1386 = vpop.f32.mrb[0].mxu0
  %v1387 = vpop.f32.mrb[0].mxu0
  %v1388 = vadd.f32 %v1100, %v1387
  %v1389 = vpop.f32.mrb[0].mxu0
  %1390 = vmatprep.mubr.bf16.mxu0 0
  %1391 = vmatmul.mubr.bf16.gmra.mrb[0].mxu0 %v1073
  %v1392 = vpop.f32.mrb[0].mxu0
  %v1393 = vadd.f32 %v1100, %v1392
  %v1394 = vpop.f32.mrb[0].mxu0
  %v1395 = vpop.f32.mrb[0].mxu0
  %v1396 = vadd.f32 %v1100, %v1395
  %v1397 = vpop.f32.mrb[0].mxu0
  %1398 = vmatprep.mubr.bf16.mxu0 0
  %1399 = vmatmul.mubr.bf16.gmra.mrb[0].mxu0 %v1074
  %v1400 = vpop.f32.mrb[0].mxu0
  %v1401 = vadd.f32 %v1100, %v1400
  %v1402 = vpop.f32.mrb[0].mxu0
  %v1403 = vpop.f32.mrb[0].mxu0
  %v1404 = vadd.f32 %v1100, %v1403
  %v1405 = vpop.f32.mrb[0].mxu0
  %1406 = vmatprep.mubr.bf16.mxu0 0
  %1407 = vmatmul.mubr.bf16.gmra.mrb[0].mxu0 %v1075
  %v1408 = vpop.f32.mrb[0].mxu0
  %v1409 = vadd.f32 %v1100, %v1408
  %v1410 = vpop.f32.mrb[0].mxu0
  %v1411 = vpop.f32.mrb[0].mxu0
  %v1412 = vadd.f32 %v1100, %v1411
  %v1413 = vpop.f32.mrb[0].mxu0
  %1414 = vmatprep.mubr.bf16.mxu0 0
  %1415 = vmatmul.mubr.bf16.gmra.mrb[0].mxu0 %v1076
  %v1416 = vpop.f32.mrb[0].mxu0
  %v1417 = vadd.f32 %v1100, %v1416
  %v1418 = vpop.f32.mrb[0].mxu0
  %v1419 = vpop.f32.mrb[0].mxu0
  %v1420 = vadd.f32 %v1100, %v1419
  %v1421 = vpop.f32.mrb[0].mxu0
  %1422 = vmatprep.mubr.bf16.mxu0 0
  %1423 = vmatmul.mubr.bf16.gmra.mrb[0].mxu0 %v1077
  %v1424 = vpop.f32.mrb[0].mxu0
  %v1425 = vadd.f32 %v1100, %v1424
  %v1426 = vpop.f32.mrb[0].mxu0
  %v1427 = vpop.f32.mrb[0].mxu0
  %v1428 = vadd.f32 %v1100, %v1427
  %v1429 = vpop.f32.mrb[0].mxu0
  %1430 = vmatprep.mubr.bf16.mxu0 0
  %1431 = vmatmul.mubr.bf16.gmra.mrb[0].mxu0 %v1078
  %v1432 = vpop.f32.mrb[0].mxu0
  %v1433 = vadd.f32 %v1100, %v1432
  %v1434 = vpop.f32.mrb[0].mxu0
  %v1435 = vpop.f32.mrb[0].mxu0
  %v1436 = vadd.f32 %v1100, %v1435
  %v1437 = vpop.f32.mrb[0].mxu0
  %1438 = vdwg.mxu0
  %v1439 = vmax.f32 %v1185, 0.0
  %v1440 = vmax.f32 %v1188, 0.0
  %v1441 = vmax.f32 %v1193, 0.0
  %v1442 = vmax.f32 %v1196, 0.0
  %v1443 = vmax.f32 %v1201, 0.0
  %v1444 = vmax.f32 %v1204, 0.0
  %v1445 = vmax.f32 %v1209, 0.0
  %v1446 = vmax.f32 %v1212, 0.0
  %v1447 = vmax.f32 %v1217, 0.0
  %v1448 = vmax.f32 %v1220, 0.0
  %v1449 = vmax.f32 %v1225, 0.0
  %v1450 = vmax.f32 %v1228, 0.0
  %v1451 = vmax.f32 %v1233, 0.0
  %v1452 = vmax.f32 %v1236, 0.0
  %v1453 = vmax.f32 %v1241, 0.0
  %v1454 = vmax.f32 %v1244, 0.0
  %v1455 = vmax.f32 %v1249, 0.0
  %v1456 = vmax.f32 %v1252, 0.0
  %v1457 = vmax.f32 %v1257, 0.0
  %v1458 = vmax.f32 %v1260, 0.0
  %v1459 = vmax.f32 %v1265, 0.0
  %v1460 = vmax.f32 %v1268, 0.0
  %v1461 = vmax.f32 %v1273, 0.0
  %v1462 = vmax.f32 %v1276, 0.0
  %v1463 = vmax.f32 %v1281, 0.0
  %v1464 = vmax.f32 %v1284, 0.0
  %v1465 = vmax.f32 %v1289, 0.0
  %v1466 = vmax.f32 %v1292, 0.0
  %v1467 = vmax.f32 %v1297, 0.0
  %v1468 = vmax.f32 %v1300, 0.0
  %v1469 = vmax.f32 %v1305, 0.0
  %v1470 = vmax.f32 %v1308, 0.0
  %v1471 = vmax.f32 %v1313, 0.0
  %v1472 = vmax.f32 %v1316, 0.0
  %v1473 = vmax.f32 %v1321, 0.0
  %v1474 = vmax.f32 %v1324, 0.0
  %v1475 = vmax.f32 %v1329, 0.0
  %v1476 = vmax.f32 %v1332, 0.0
  %v1477 = vmax.f32 %v1337, 0.0
  %v1478 = vmax.f32 %v1340, 0.0
  %v1479 = vmax.f32 %v1345, 0.0
  %v1480 = vmax.f32 %v1348, 0.0
  %v1481 = vmax.f32 %v1353, 0.0
  %v1482 = vmax.f32 %v1356, 0.0
  %v1483 = vmax.f32 %v1361, 0.0
  %v1484 = vmax.f32 %v1364, 0.0
  %v1485 = vmax.f32 %v1369, 0.0
  %v1486 = vmax.f32 %v1372, 0.0
  %v1487 = vmax.f32 %v1377, 0.0
  %v1488 = vmax.f32 %v1380, 0.0
  %v1489 = vmax.f32 %v1385, 0.0
  %v1490 = vmax.f32 %v1388, 0.0
  %v1491 = vmax.f32 %v1393, 0.0
  %v1492 = vmax.f32 %v1396, 0.0
  %v1493 = vmax.f32 %v1401, 0.0
  %v1494 = vmax.f32 %v1404, 0.0
  %v1495 = vmax.f32 %v1409, 0.0
  %v1496 = vmax.f32 %v1412, 0.0
  %v1497 = vmax.f32 %v1417, 0.0
  %v1498 = vmax.f32 %v1420, 0.0
  %v1499 = vmax.f32 %v1425, 0.0
  %v1500 = vmax.f32 %v1428, 0.0
  %v1501 = vmax.f32 %v1433, 0.0
  %v1502 = vmax.f32 %v1436, 0.0
  %v1503 = vpack.c.bf16 %v1440, %v1439
  %v1504 = vpack.c.bf16 %v1442, %v1441
  %v1505 = vpack.c.bf16 %v1444, %v1443
  %v1506 = vpack.c.bf16 %v1446, %v1445
  %v1507 = vpack.c.bf16 %v1448, %v1447
  %v1508 = vpack.c.bf16 %v1450, %v1449
  %v1509 = vpack.c.bf16 %v1452, %v1451
  %v1510 = vpack.c.bf16 %v1454, %v1453
  %v1511 = vpack.c.bf16 %v1456, %v1455
  %v1512 = vpack.c.bf16 %v1458, %v1457
  %v1513 = vpack.c.bf16 %v1460, %v1459
  %v1514 = vpack.c.bf16 %v1462, %v1461
  %v1515 = vpack.c.bf16 %v1464, %v1463
  %v1516 = vpack.c.bf16 %v1466, %v1465
  %v1517 = vpack.c.bf16 %v1468, %v1467
  %v1518 = vpack.c.bf16 %v1470, %v1469
  %v1519 = vpack.c.bf16 %v1472, %v1471
  %v1520 = vpack.c.bf16 %v1474, %v1473
  %v1521 = vpack.c.bf16 %v1476, %v1475
  %v1522 = vpack.c.bf16 %v1478, %v1477
  %v1523 = vpack.c.bf16 %v1480, %v1479
  %v1524 = vpack.c.bf16 %v1482, %v1481
  %v1525 = vpack.c.bf16 %v1484, %v1483
  %v1526 = vpack.c.bf16 %v1486, %v1485
  %v1527 = vpack.c.bf16 %v1488, %v1487
  %v1528 = vpack.c.bf16 %v1490, %v1489
  %v1529 = vpack.c.bf16 %v1492, %v1491
  %v1530 = vpack.c.bf16 %v1494, %v1493
  %v1531 = vpack.c.bf16 %v1496, %v1495
  %v1532 = vpack.c.bf16 %v1498, %v1497
  %v1533 = vpack.c.bf16 %v1500, %v1499
  %v1534 = vpack.c.bf16 %v1502, %v1501
  %v1535 = vld [vmem:[%s7] sm:$0xf]
  %v1536 = vld [vmem:[%s7 + $0x4] sm:$0xf]
  %v1537 = vld [vmem:[%s7 + $0x8] sm:$0xf]
  %v1538 = vld [vmem:[%s7 + $0xc] sm:$0xf]
  %v1539 = vld [vmem:[%s7 + $0x10] sm:$0xf]
  %v1540 = vld [vmem:[%s7 + $0x14] sm:$0xf]
  %v1541 = vld [vmem:[%s7 + $0x18] sm:$0xf]
  %v1542 = vld [vmem:[%s7 + $0x1c] sm:$0xf]
  %v1543 = vld [vmem:[%s7 + $0x20] sm:$0xf]
  %v1544 = vld [vmem:[%s7 + $0x24] sm:$0xf]
  %v1545 = vld [vmem:[%s7 + $0x28] sm:$0xf]
  %v1546 = vld [vmem:[%s7 + $0x2c] sm:$0xf]
  %v1547 = vld [vmem:[%s7 + $0x30] sm:$0xf]
  %v1548 = vld [vmem:[%s7 + $0x34] sm:$0xf]
  %v1549 = vld [vmem:[%s7 + $0x38] sm:$0xf]
  %v1550 = vld [vmem:[%s7 + $0x3c] sm:$0xf]
  %v1551 = vld [vmem:[%s8] sm:$0x1]
  %v1553 = vlaneseq
  %v1554 = vshrl.u32 %v1553, 7
  %v1555 = vsub.s32 0, %v1554
  %v1556 = vrot.slane %v1551, %v1555
  %v1574 = vunpack.c.l.b16 %v1535
  %v1575 = vunpack.c.l.b16 %v1536
  %v1576 = vunpack.c.l.b16 %v1537
  %v1577 = vunpack.c.l.b16 %v1538
  %v1578 = vunpack.c.l.b16 %v1539
  %v1579 = vunpack.c.l.b16 %v1540
  %v1580 = vunpack.c.l.b16 %v1541
  %v1581 = vunpack.c.l.b16 %v1542
  %v1582 = vunpack.c.l.b16 %v1543
  %v1583 = vunpack.c.l.b16 %v1544
  %v1584 = vunpack.c.l.b16 %v1545
  %v1585 = vunpack.c.l.b16 %v1546
  %v1586 = vunpack.c.l.b16 %v1547
  %v1587 = vunpack.c.l.b16 %v1548
  %v1588 = vunpack.c.l.b16 %v1549
  %v1589 = vunpack.c.l.b16 %v1550
  %v1590 = vpack.c.b16 %v1575, %v1574
  %v1591 = vpack.c.b16 %v1577, %v1576
  %v1592 = vpack.c.b16 %v1579, %v1578
  %v1593 = vpack.c.b16 %v1581, %v1580
  %v1594 = vpack.c.b16 %v1583, %v1582
  %v1595 = vpack.c.b16 %v1585, %v1584
  %v1596 = vpack.c.b16 %v1587, %v1586
  %v1597 = vpack.c.b16 %v1589, %v1588
  %1606 = vmatprep.subr.bf16.mxu0 0
  %1607 = vmatpush1.bf16.msra.mxu0 %v1590
  %1608 = vmatprep.subr.bf16.mxu0 0
  %1609 = vmatpush1.bf16.msra.mxu0 %v1591
  %1610 = vmatprep.subr.bf16.mxu0 0
  %1611 = vmatpush1.bf16.msra.mxu0 %v1592
  %1612 = vmatprep.subr.bf16.mxu0 0
  %1613 = vmatpush1.bf16.msra.mxu0 %v1593
  %1614 = vmatprep.subr.bf16.mxu0 0
  %1615 = vmatpush1.bf16.msra.mxu0 %v1594
  %1616 = vmatprep.subr.bf16.mxu0 0
  %1617 = vmatpush1.bf16.msra.mxu0 %v1595
  %1618 = vmatprep.subr.bf16.mxu0 0
  %1619 = vmatpush1.bf16.msra.mxu0 %v1596
  %1620 = vmatprep.subr.bf16.mxu0 0
  %1621 = vmatpush1.bf16.msra.mxu0 %v1597
  %1622 = vmatprep.subr.bf16.mxu0 0
  %1623 = vmatpush1.bf16.msra.mxu0 0
  %1624 = vmatprep.subr.bf16.mxu0 0
  %1625 = vmatpush1.bf16.msra.mxu0 0
  %1626 = vmatprep.subr.bf16.mxu0 0
  %1627 = vmatpush1.bf16.msra.mxu0 0
  %1628 = vmatprep.subr.bf16.mxu0 0
  %1629 = vmatpush1.bf16.msra.mxu0 0
  %1630 = vmatprep.subr.bf16.mxu0 0
  %1631 = vmatpush1.bf16.msra.mxu0 0
  %1632 = vmatprep.subr.bf16.mxu0 0
  %1633 = vmatpush1.bf16.msra.mxu0 0
  %1634 = vmatprep.subr.bf16.mxu0 0
  %1635 = vmatpush1.bf16.msra.mxu0 0
  %1636 = vmatprep.subr.bf16.mxu0 0
  %1637 = vmatpush1.bf16.msra.mxu0 0
  %1638 = vmatprep.mubr.bf16.mxu0 0
  %1639 = vmatmul.mubr.bf16.gmra.mrb[0].mxu0 %v1503
  %v1640 = vpop.f32.mrb[0].mxu0
  %v1641 = vadd.f32 %v1556, %v1640
  %v1642 = vpop.f32.mrb[0].mxu0
  %v1643 = vpop.f32.mrb[0].mxu0
  %v1644 = vadd.f32 %v1556, %v1643
  %v1645 = vpop.f32.mrb[0].mxu0
  %1646 = vmatprep.mubr.bf16.mxu0 0
  %1647 = vmatmul.mubr.bf16.gmra.mrb[0].mxu0 %v1504
  %v1648 = vpop.f32.mrb[0].mxu0
  %v1649 = vadd.f32 %v1556, %v1648
  %v1650 = vpop.f32.mrb[0].mxu0
  %v1651 = vpop.f32.mrb[0].mxu0
  %v1652 = vadd.f32 %v1556, %v1651
  %v1653 = vpop.f32.mrb[0].mxu0
  %1654 = vmatprep.mubr.bf16.mxu0 0
  %1655 = vmatmul.mubr.bf16.gmra.mrb[0].mxu0 %v1505
  %v1656 = vpop.f32.mrb[0].mxu0
  %v1657 = vadd.f32 %v1556, %v1656
  %v1658 = vpop.f32.mrb[0].mxu0
  %v1659 = vpop.f32.mrb[0].mxu0
  %v1660 = vadd.f32 %v1556, %v1659
  %v1661 = vpop.f32.mrb[0].mxu0
  %1662 = vmatprep.mubr.bf16.mxu0 0
  %1663 = vmatmul.mubr.bf16.gmra.mrb[0].mxu0 %v1506
  %v1664 = vpop.f32.mrb[0].mxu0
  %v1665 = vadd.f32 %v1556, %v1664
  %v1666 = vpop.f32.mrb[0].mxu0
  %v1667 = vpop.f32.mrb[0].mxu0
  %v1668 = vadd.f32 %v1556, %v1667
  %v1669 = vpop.f32.mrb[0].mxu0
  %1670 = vmatprep.mubr.bf16.mxu0 0
  %1671 = vmatmul.mubr.bf16.gmra.mrb[0].mxu0 %v1507
  %v1672 = vpop.f32.mrb[0].mxu0
  %v1673 = vadd.f32 %v1556, %v1672
  %v1674 = vpop.f32.mrb[0].mxu0
  %v1675 = vpop.f32.mrb[0].mxu0
  %v1676 = vadd.f32 %v1556, %v1675
  %v1677 = vpop.f32.mrb[0].mxu0
  %1678 = vmatprep.mubr.bf16.mxu0 0
  %1679 = vmatmul.mubr.bf16.gmra.mrb[0].mxu0 %v1508
  %v1680 = vpop.f32.mrb[0].mxu0
  %v1681 = vadd.f32 %v1556, %v1680
  %v1682 = vpop.f32.mrb[0].mxu0
  %v1683 = vpop.f32.mrb[0].mxu0
  %v1684 = vadd.f32 %v1556, %v1683
  %v1685 = vpop.f32.mrb[0].mxu0
  %1686 = vmatprep.mubr.bf16.mxu0 0
  %1687 = vmatmul.mubr.bf16.gmra.mrb[0].mxu0 %v1509
  %v1688 = vpop.f32.mrb[0].mxu0
  %v1689 = vadd.f32 %v1556, %v1688
  %v1690 = vpop.f32.mrb[0].mxu0
  %v1691 = vpop.f32.mrb[0].mxu0
  %v1692 = vadd.f32 %v1556, %v1691
  %v1693 = vpop.f32.mrb[0].mxu0
  %1694 = vmatprep.mubr.bf16.mxu0 0
  %1695 = vmatmul.mubr.bf16.gmra.mrb[0].mxu0 %v1510
  %v1696 = vpop.f32.mrb[0].mxu0
  %v1697 = vadd.f32 %v1556, %v1696
  %v1698 = vpop.f32.mrb[0].mxu0
  %v1699 = vpop.f32.mrb[0].mxu0
  %v1700 = vadd.f32 %v1556, %v1699
  %v1701 = vpop.f32.mrb[0].mxu0
  %1702 = vmatprep.mubr.bf16.mxu0 0
  %1703 = vmatmul.mubr.bf16.gmra.mrb[0].mxu0 %v1511
  %v1704 = vpop.f32.mrb[0].mxu0
  %v1705 = vadd.f32 %v1556, %v1704
  %v1706 = vpop.f32.mrb[0].mxu0
  %v1707 = vpop.f32.mrb[0].mxu0
  %v1708 = vadd.f32 %v1556, %v1707
  %v1709 = vpop.f32.mrb[0].mxu0
  %1710 = vmatprep.mubr.bf16.mxu0 0
  %1711 = vmatmul.mubr.bf16.gmra.mrb[0].mxu0 %v1512
  %v1712 = vpop.f32.mrb[0].mxu0
  %v1713 = vadd.f32 %v1556, %v1712
  %v1714 = vpop.f32.mrb[0].mxu0
  %v1715 = vpop.f32.mrb[0].mxu0
  %v1716 = vadd.f32 %v1556, %v1715
  %v1717 = vpop.f32.mrb[0].mxu0
  %1718 = vmatprep.mubr.bf16.mxu0 0
  %1719 = vmatmul.mubr.bf16.gmra.mrb[0].mxu0 %v1513
  %v1720 = vpop.f32.mrb[0].mxu0
  %v1721 = vadd.f32 %v1556, %v1720
  %v1722 = vpop.f32.mrb[0].mxu0
  %v1723 = vpop.f32.mrb[0].mxu0
  %v1724 = vadd.f32 %v1556, %v1723
  %v1725 = vpop.f32.mrb[0].mxu0
  %1726 = vmatprep.mubr.bf16.mxu0 0
  %1727 = vmatmul.mubr.bf16.gmra.mrb[0].mxu0 %v1514
  %v1728 = vpop.f32.mrb[0].mxu0
  %v1729 = vadd.f32 %v1556, %v1728
  %v1730 = vpop.f32.mrb[0].mxu0
  %v1731 = vpop.f32.mrb[0].mxu0
  %v1732 = vadd.f32 %v1556, %v1731
  %v1733 = vpop.f32.mrb[0].mxu0
  %1734 = vmatprep.mubr.bf16.mxu0 0
  %1735 = vmatmul.mubr.bf16.gmra.mrb[0].mxu0 %v1515
  %v1736 = vpop.f32.mrb[0].mxu0
  %v1737 = vadd.f32 %v1556, %v1736
  %v1738 = vpop.f32.mrb[0].mxu0
  %v1739 = vpop.f32.mrb[0].mxu0
  %v1740 = vadd.f32 %v1556, %v1739
  %v1741 = vpop.f32.mrb[0].mxu0
  %1742 = vmatprep.mubr.bf16.mxu0 0
  %1743 = vmatmul.mubr.bf16.gmra.mrb[0].mxu0 %v1516
  %v1744 = vpop.f32.mrb[0].mxu0
  %v1745 = vadd.f32 %v1556, %v1744
  %v1746 = vpop.f32.mrb[0].mxu0
  %v1747 = vpop.f32.mrb[0].mxu0
  %v1748 = vadd.f32 %v1556, %v1747
  %v1749 = vpop.f32.mrb[0].mxu0
  %1750 = vmatprep.mubr.bf16.mxu0 0
  %1751 = vmatmul.mubr.bf16.gmra.mrb[0].mxu0 %v1517
  %v1752 = vpop.f32.mrb[0].mxu0
  %v1753 = vadd.f32 %v1556, %v1752
  %v1754 = vpop.f32.mrb[0].mxu0
  %v1755 = vpop.f32.mrb[0].mxu0
  %v1756 = vadd.f32 %v1556, %v1755
  %v1757 = vpop.f32.mrb[0].mxu0
  %1758 = vmatprep.mubr.bf16.mxu0 0
  %1759 = vmatmul.mubr.bf16.gmra.mrb[0].mxu0 %v1518
  %v1760 = vpop.f32.mrb[0].mxu0
  %v1761 = vadd.f32 %v1556, %v1760
  %v1762 = vpop.f32.mrb[0].mxu0
  %v1763 = vpop.f32.mrb[0].mxu0
  %v1764 = vadd.f32 %v1556, %v1763
  %v1765 = vpop.f32.mrb[0].mxu0
  %1766 = vmatprep.mubr.bf16.mxu0 0
  %1767 = vmatmul.mubr.bf16.gmra.mrb[0].mxu0 %v1519
  %v1768 = vpop.f32.mrb[0].mxu0
  %v1769 = vadd.f32 %v1556, %v1768
  %v1770 = vpop.f32.mrb[0].mxu0
  %v1771 = vpop.f32.mrb[0].mxu0
  %v1772 = vadd.f32 %v1556, %v1771
  %v1773 = vpop.f32.mrb[0].mxu0
  %1774 = vmatprep.mubr.bf16.mxu0 0
  %1775 = vmatmul.mubr.bf16.gmra.mrb[0].mxu0 %v1520
  %v1776 = vpop.f32.mrb[0].mxu0
  %v1777 = vadd.f32 %v1556, %v1776
  %v1778 = vpop.f32.mrb[0].mxu0
  %v1779 = vpop.f32.mrb[0].mxu0
  %v1780 = vadd.f32 %v1556, %v1779
  %v1781 = vpop.f32.mrb[0].mxu0
  %1782 = vmatprep.mubr.bf16.mxu0 0
  %1783 = vmatmul.mubr.bf16.gmra.mrb[0].mxu0 %v1521
  %v1784 = vpop.f32.mrb[0].mxu0
  %v1785 = vadd.f32 %v1556, %v1784
  %v1786 = vpop.f32.mrb[0].mxu0
  %v1787 = vpop.f32.mrb[0].mxu0
  %v1788 = vadd.f32 %v1556, %v1787
  %v1789 = vpop.f32.mrb[0].mxu0
  %1790 = vmatprep.mubr.bf16.mxu0 0
  %1791 = vmatmul.mubr.bf16.gmra.mrb[0].mxu0 %v1522
  %v1792 = vpop.f32.mrb[0].mxu0
  %v1793 = vadd.f32 %v1556, %v1792
  %v1794 = vpop.f32.mrb[0].mxu0
  %v1795 = vpop.f32.mrb[0].mxu0
  %v1796 = vadd.f32 %v1556, %v1795
  %v1797 = vpop.f32.mrb[0].mxu0
  %1798 = vmatprep.mubr.bf16.mxu0 0
  %1799 = vmatmul.mubr.bf16.gmra.mrb[0].mxu0 %v1523
  %v1800 = vpop.f32.mrb[0].mxu0
  %v1801 = vadd.f32 %v1556, %v1800
  %v1802 = vpop.f32.mrb[0].mxu0
  %v1803 = vpop.f32.mrb[0].mxu0
  %v1804 = vadd.f32 %v1556, %v1803
  %v1805 = vpop.f32.mrb[0].mxu0
  %1806 = vmatprep.mubr.bf16.mxu0 0
  %1807 = vmatmul.mubr.bf16.gmra.mrb[0].mxu0 %v1524
  %v1808 = vpop.f32.mrb[0].mxu0
  %v1809 = vadd.f32 %v1556, %v1808
  %v1810 = vpop.f32.mrb[0].mxu0
  %v1811 = vpop.f32.mrb[0].mxu0
  %v1812 = vadd.f32 %v1556, %v1811
  %v1813 = vpop.f32.mrb[0].mxu0
  %1814 = vmatprep.mubr.bf16.mxu0 0
  %1815 = vmatmul.mubr.bf16.gmra.mrb[0].mxu0 %v1525
  %v1816 = vpop.f32.mrb[0].mxu0
  %v1817 = vadd.f32 %v1556, %v1816
  %v1818 = vpop.f32.mrb[0].mxu0
  %v1819 = vpop.f32.mrb[0].mxu0
  %v1820 = vadd.f32 %v1556, %v1819
  %v1821 = vpop.f32.mrb[0].mxu0
  %1822 = vmatprep.mubr.bf16.mxu0 0
  %1823 = vmatmul.mubr.bf16.gmra.mrb[0].mxu0 %v1526
  %v1824 = vpop.f32.mrb[0].mxu0
  %v1825 = vadd.f32 %v1556, %v1824
  %v1826 = vpop.f32.mrb[0].mxu0
  %v1827 = vpop.f32.mrb[0].mxu0
  %v1828 = vadd.f32 %v1556, %v1827
  %v1829 = vpop.f32.mrb[0].mxu0
  %1830 = vmatprep.mubr.bf16.mxu0 0
  %1831 = vmatmul.mubr.bf16.gmra.mrb[0].mxu0 %v1527
  %v1832 = vpop.f32.mrb[0].mxu0
  %v1833 = vadd.f32 %v1556, %v1832
  %v1834 = vpop.f32.mrb[0].mxu0
  %v1835 = vpop.f32.mrb[0].mxu0
  %v1836 = vadd.f32 %v1556, %v1835
  %v1837 = vpop.f32.mrb[0].mxu0
  %1838 = vmatprep.mubr.bf16.mxu0 0
  %1839 = vmatmul.mubr.bf16.gmra.mrb[0].mxu0 %v1528
  %v1840 = vpop.f32.mrb[0].mxu0
  %v1841 = vadd.f32 %v1556, %v1840
  %v1842 = vpop.f32.mrb[0].mxu0
  %v1843 = vpop.f32.mrb[0].mxu0
  %v1844 = vadd.f32 %v1556, %v1843
  %v1845 = vpop.f32.mrb[0].mxu0
  %1846 = vmatprep.mubr.bf16.mxu0 0
  %1847 = vmatmul.mubr.bf16.gmra.mrb[0].mxu0 %v1529
  %v1848 = vpop.f32.mrb[0].mxu0
  %v1849 = vadd.f32 %v1556, %v1848
  %v1850 = vpop.f32.mrb[0].mxu0
  %v1851 = vpop.f32.mrb[0].mxu0
  %v1852 = vadd.f32 %v1556, %v1851
  %v1853 = vpop.f32.mrb[0].mxu0
  %1854 = vmatprep.mubr.bf16.mxu0 0
  %1855 = vmatmul.mubr.bf16.gmra.mrb[0].mxu0 %v1530
  %v1856 = vpop.f32.mrb[0].mxu0
  %v1857 = vadd.f32 %v1556, %v1856
  %v1858 = vpop.f32.mrb[0].mxu0
  %v1859 = vpop.f32.mrb[0].mxu0
  %v1860 = vadd.f32 %v1556, %v1859
  %v1861 = vpop.f32.mrb[0].mxu0
  %1862 = vmatprep.mubr.bf16.mxu0 0
  %1863 = vmatmul.mubr.bf16.gmra.mrb[0].mxu0 %v1531
  %v1864 = vpop.f32.mrb[0].mxu0
  %v1865 = vadd.f32 %v1556, %v1864
  %v1866 = vpop.f32.mrb[0].mxu0
  %v1867 = vpop.f32.mrb[0].mxu0
  %v1868 = vadd.f32 %v1556, %v1867
  %v1869 = vpop.f32.mrb[0].mxu0
  %1870 = vmatprep.mubr.bf16.mxu0 0
  %1871 = vmatmul.mubr.bf16.gmra.mrb[0].mxu0 %v1532
  %v1872 = vpop.f32.mrb[0].mxu0
  %v1873 = vadd.f32 %v1556, %v1872
  %v1874 = vpop.f32.mrb[0].mxu0
  %v1875 = vpop.f32.mrb[0].mxu0
  %v1876 = vadd.f32 %v1556, %v1875
  %v1877 = vpop.f32.mrb[0].mxu0
  %1878 = vmatprep.mubr.bf16.mxu0 0
  %1879 = vmatmul.mubr.bf16.gmra.mrb[0].mxu0 %v1533
  %v1880 = vpop.f32.mrb[0].mxu0
  %v1881 = vadd.f32 %v1556, %v1880
  %v1882 = vpop.f32.mrb[0].mxu0
  %v1883 = vpop.f32.mrb[0].mxu0
  %v1884 = vadd.f32 %v1556, %v1883
  %v1885 = vpop.f32.mrb[0].mxu0
  %1886 = vmatprep.mubr.bf16.mxu0 0
  %1887 = vmatmul.mubr.bf16.gmra.mrb[0].mxu0 %v1534
  %v1888 = vpop.f32.mrb[0].mxu0
  %v1889 = vadd.f32 %v1556, %v1888
  %v1890 = vpop.f32.mrb[0].mxu0
  %v1891 = vpop.f32.mrb[0].mxu0
  %v1892 = vadd.f32 %v1556, %v1891
  %v1893 = vpop.f32.mrb[0].mxu0
  %1894 = vdwg.mxu0
  %v1895 = vlaneseq
  %v1896 = vand.u32 %v1895, 127
  %vm1897 = vcmp.lt.s32.totalorder %v1896, 3
  %v1898 = vsel %vm1897, 1, 0
  %vm1899 = vcmp.eq.s32.totalorder %v1898, 1
  %v1900 = vsel %vm1899, %v1641, -1e+30
  %v1901 = vsel %vm1899, %v1644, -1e+30
  %v1902 = vsel %vm1899, %v1649, -1e+30
  %v1903 = vsel %vm1899, %v1652, -1e+30
  %v1904 = vsel %vm1899, %v1657, -1e+30
  %v1905 = vsel %vm1899, %v1660, -1e+30
  %v1906 = vsel %vm1899, %v1665, -1e+30
  %v1907 = vsel %vm1899, %v1668, -1e+30
  %v1908 = vsel %vm1899, %v1673, -1e+30
  %v1909 = vsel %vm1899, %v1676, -1e+30
  %v1910 = vsel %vm1899, %v1681, -1e+30
  %v1911 = vsel %vm1899, %v1684, -1e+30
  %v1912 = vsel %vm1899, %v1689, -1e+30
  %v1913 = vsel %vm1899, %v1692, -1e+30
  %v1914 = vsel %vm1899, %v1697, -1e+30
  %v1915 = vsel %vm1899, %v1700, -1e+30
  %v1916 = vsel %vm1899, %v1705, -1e+30
  %v1917 = vsel %vm1899, %v1708, -1e+30
  %v1918 = vsel %vm1899, %v1713, -1e+30
  %v1919 = vsel %vm1899, %v1716, -1e+30
  %v1920 = vsel %vm1899, %v1721, -1e+30
  %v1921 = vsel %vm1899, %v1724, -1e+30
  %v1922 = vsel %vm1899, %v1729, -1e+30
  %v1923 = vsel %vm1899, %v1732, -1e+30
  %v1924 = vsel %vm1899, %v1737, -1e+30
  %v1925 = vsel %vm1899, %v1740, -1e+30
  %v1926 = vsel %vm1899, %v1745, -1e+30
  %v1927 = vsel %vm1899, %v1748, -1e+30
  %v1928 = vsel %vm1899, %v1753, -1e+30
  %v1929 = vsel %vm1899, %v1756, -1e+30
  %v1930 = vsel %vm1899, %v1761, -1e+30
  %v1931 = vsel %vm1899, %v1764, -1e+30
  %v1932 = vsel %vm1899, %v1769, -1e+30
  %v1933 = vsel %vm1899, %v1772, -1e+30
  %v1934 = vsel %vm1899, %v1777, -1e+30
  %v1935 = vsel %vm1899, %v1780, -1e+30
  %v1936 = vsel %vm1899, %v1785, -1e+30
  %v1937 = vsel %vm1899, %v1788, -1e+30
  %v1938 = vsel %vm1899, %v1793, -1e+30
  %v1939 = vsel %vm1899, %v1796, -1e+30
  %v1940 = vsel %vm1899, %v1801, -1e+30
  %v1941 = vsel %vm1899, %v1804, -1e+30
  %v1942 = vsel %vm1899, %v1809, -1e+30
  %v1943 = vsel %vm1899, %v1812, -1e+30
  %v1944 = vsel %vm1899, %v1817, -1e+30
  %v1945 = vsel %vm1899, %v1820, -1e+30
  %v1946 = vsel %vm1899, %v1825, -1e+30
  %v1947 = vsel %vm1899, %v1828, -1e+30
  %v1948 = vsel %vm1899, %v1833, -1e+30
  %v1949 = vsel %vm1899, %v1836, -1e+30
  %v1950 = vsel %vm1899, %v1841, -1e+30
  %v1951 = vsel %vm1899, %v1844, -1e+30
  %v1952 = vsel %vm1899, %v1849, -1e+30
  %v1953 = vsel %vm1899, %v1852, -1e+30
  %v1954 = vsel %vm1899, %v1857, -1e+30
  %v1955 = vsel %vm1899, %v1860, -1e+30
  %v1956 = vsel %vm1899, %v1865, -1e+30
  %v1957 = vsel %vm1899, %v1868, -1e+30
  %v1958 = vsel %vm1899, %v1873, -1e+30
  %v1959 = vsel %vm1899, %v1876, -1e+30
  %v1960 = vsel %vm1899, %v1881, -1e+30
  %v1961 = vsel %vm1899, %v1884, -1e+30
  %v1962 = vsel %vm1899, %v1889, -1e+30
  %v1963 = vsel %vm1899, %v1892, -1e+30
  %1964 = vmax.xlane.f32.xlu0 %v1900
  %v1965 = vpop.xlane.xlu0 %1964
  %1966 = vmax.xlane.f32.xlu0 %v1901
  %v1967 = vpop.xlane.xlu0 %1966
  %1968 = vmax.xlane.f32.xlu0 %v1902
  %v1969 = vpop.xlane.xlu0 %1968
  %1970 = vmax.xlane.f32.xlu0 %v1903
  %v1971 = vpop.xlane.xlu0 %1970
  %1972 = vmax.xlane.f32.xlu0 %v1904
  %v1973 = vpop.xlane.xlu0 %1972
  %1974 = vmax.xlane.f32.xlu0 %v1905
  %v1975 = vpop.xlane.xlu0 %1974
  %1976 = vmax.xlane.f32.xlu0 %v1906
  %v1977 = vpop.xlane.xlu0 %1976
  %1978 = vmax.xlane.f32.xlu0 %v1907
  %v1979 = vpop.xlane.xlu0 %1978
  %1980 = vmax.xlane.f32.xlu0 %v1908
  %v1981 = vpop.xlane.xlu0 %1980
  %1982 = vmax.xlane.f32.xlu0 %v1909
  %v1983 = vpop.xlane.xlu0 %1982
  %1984 = vmax.xlane.f32.xlu0 %v1910
  %v1985 = vpop.xlane.xlu0 %1984
  %1986 = vmax.xlane.f32.xlu0 %v1911
  %v1987 = vpop.xlane.xlu0 %1986
  %1988 = vmax.xlane.f32.xlu0 %v1912
  %v1989 = vpop.xlane.xlu0 %1988
  %1990 = vmax.xlane.f32.xlu0 %v1913
  %v1991 = vpop.xlane.xlu0 %1990
  %1992 = vmax.xlane.f32.xlu0 %v1914
  %v1993 = vpop.xlane.xlu0 %1992
  %1994 = vmax.xlane.f32.xlu0 %v1915
  %v1995 = vpop.xlane.xlu0 %1994
  %1996 = vmax.xlane.f32.xlu0 %v1916
  %v1997 = vpop.xlane.xlu0 %1996
  %1998 = vmax.xlane.f32.xlu0 %v1917
  %v1999 = vpop.xlane.xlu0 %1998
  %2000 = vmax.xlane.f32.xlu0 %v1918
  %v2001 = vpop.xlane.xlu0 %2000
  %2002 = vmax.xlane.f32.xlu0 %v1919
  %v2003 = vpop.xlane.xlu0 %2002
  %2004 = vmax.xlane.f32.xlu0 %v1920
  %v2005 = vpop.xlane.xlu0 %2004
  %2006 = vmax.xlane.f32.xlu0 %v1921
  %v2007 = vpop.xlane.xlu0 %2006
  %2008 = vmax.xlane.f32.xlu0 %v1922
  %v2009 = vpop.xlane.xlu0 %2008
  %2010 = vmax.xlane.f32.xlu0 %v1923
  %v2011 = vpop.xlane.xlu0 %2010
  %2012 = vmax.xlane.f32.xlu0 %v1924
  %v2013 = vpop.xlane.xlu0 %2012
  %2014 = vmax.xlane.f32.xlu0 %v1925
  %v2015 = vpop.xlane.xlu0 %2014
  %2016 = vmax.xlane.f32.xlu0 %v1926
  %v2017 = vpop.xlane.xlu0 %2016
  %2018 = vmax.xlane.f32.xlu0 %v1927
  %v2019 = vpop.xlane.xlu0 %2018
  %2020 = vmax.xlane.f32.xlu0 %v1928
  %v2021 = vpop.xlane.xlu0 %2020
  %2022 = vmax.xlane.f32.xlu0 %v1929
  %v2023 = vpop.xlane.xlu0 %2022
  %2024 = vmax.xlane.f32.xlu0 %v1930
  %v2025 = vpop.xlane.xlu0 %2024
  %2026 = vmax.xlane.f32.xlu0 %v1931
  %v2027 = vpop.xlane.xlu0 %2026
  %2028 = vmax.xlane.f32.xlu0 %v1932
  %v2029 = vpop.xlane.xlu0 %2028
  %2030 = vmax.xlane.f32.xlu0 %v1933
  %v2031 = vpop.xlane.xlu0 %2030
  %2032 = vmax.xlane.f32.xlu0 %v1934
  %v2033 = vpop.xlane.xlu0 %2032
  %2034 = vmax.xlane.f32.xlu0 %v1935
  %v2035 = vpop.xlane.xlu0 %2034
  %2036 = vmax.xlane.f32.xlu0 %v1936
  %v2037 = vpop.xlane.xlu0 %2036
  %2038 = vmax.xlane.f32.xlu0 %v1937
  %v2039 = vpop.xlane.xlu0 %2038
  %2040 = vmax.xlane.f32.xlu0 %v1938
  %v2041 = vpop.xlane.xlu0 %2040
  %2042 = vmax.xlane.f32.xlu0 %v1939
  %v2043 = vpop.xlane.xlu0 %2042
  %2044 = vmax.xlane.f32.xlu0 %v1940
  %v2045 = vpop.xlane.xlu0 %2044
  %2046 = vmax.xlane.f32.xlu0 %v1941
  %v2047 = vpop.xlane.xlu0 %2046
  %2048 = vmax.xlane.f32.xlu0 %v1942
  %v2049 = vpop.xlane.xlu0 %2048
  %2050 = vmax.xlane.f32.xlu0 %v1943
  %v2051 = vpop.xlane.xlu0 %2050
  %2052 = vmax.xlane.f32.xlu0 %v1944
  %v2053 = vpop.xlane.xlu0 %2052
  %2054 = vmax.xlane.f32.xlu0 %v1945
  %v2055 = vpop.xlane.xlu0 %2054
  %2056 = vmax.xlane.f32.xlu0 %v1946
  %v2057 = vpop.xlane.xlu0 %2056
  %2058 = vmax.xlane.f32.xlu0 %v1947
  %v2059 = vpop.xlane.xlu0 %2058
  %2060 = vmax.xlane.f32.xlu0 %v1948
  %v2061 = vpop.xlane.xlu0 %2060
  %2062 = vmax.xlane.f32.xlu0 %v1949
  %v2063 = vpop.xlane.xlu0 %2062
  %2064 = vmax.xlane.f32.xlu0 %v1950
  %v2065 = vpop.xlane.xlu0 %2064
  %2066 = vmax.xlane.f32.xlu0 %v1951
  %v2067 = vpop.xlane.xlu0 %2066
  %2068 = vmax.xlane.f32.xlu0 %v1952
  %v2069 = vpop.xlane.xlu0 %2068
  %2070 = vmax.xlane.f32.xlu0 %v1953
  %v2071 = vpop.xlane.xlu0 %2070
  %2072 = vmax.xlane.f32.xlu0 %v1954
  %v2073 = vpop.xlane.xlu0 %2072
  %2074 = vmax.xlane.f32.xlu0 %v1955
  %v2075 = vpop.xlane.xlu0 %2074
  %2076 = vmax.xlane.f32.xlu0 %v1956
  %v2077 = vpop.xlane.xlu0 %2076
  %2078 = vmax.xlane.f32.xlu0 %v1957
  %v2079 = vpop.xlane.xlu0 %2078
  %2080 = vmax.xlane.f32.xlu0 %v1958
  %v2081 = vpop.xlane.xlu0 %2080
  %2082 = vmax.xlane.f32.xlu0 %v1959
  %v2083 = vpop.xlane.xlu0 %2082
  %2084 = vmax.xlane.f32.xlu0 %v1960
  %v2085 = vpop.xlane.xlu0 %2084
  %2086 = vmax.xlane.f32.xlu0 %v1961
  %v2087 = vpop.xlane.xlu0 %2086
  %2088 = vmax.xlane.f32.xlu0 %v1962
  %v2089 = vpop.xlane.xlu0 %2088
  %2090 = vmax.xlane.f32.xlu0 %v1963
  %v2091 = vpop.xlane.xlu0 %2090
  %v2092 = vsub.f32 %v1641, %v1965
  %v2093 = vsub.f32 %v1644, %v1967
  %v2094 = vsub.f32 %v1649, %v1969
  %v2095 = vsub.f32 %v1652, %v1971
  %v2096 = vsub.f32 %v1657, %v1973
  %v2097 = vsub.f32 %v1660, %v1975
  %v2098 = vsub.f32 %v1665, %v1977
  %v2099 = vsub.f32 %v1668, %v1979
  %v2100 = vsub.f32 %v1673, %v1981
  %v2101 = vsub.f32 %v1676, %v1983
  %v2102 = vsub.f32 %v1681, %v1985
  %v2103 = vsub.f32 %v1684, %v1987
  %v2104 = vsub.f32 %v1689, %v1989
  %v2105 = vsub.f32 %v1692, %v1991
  %v2106 = vsub.f32 %v1697, %v1993
  %v2107 = vsub.f32 %v1700, %v1995
  %v2108 = vsub.f32 %v1705, %v1997
  %v2109 = vsub.f32 %v1708, %v1999
  %v2110 = vsub.f32 %v1713, %v2001
  %v2111 = vsub.f32 %v1716, %v2003
  %v2112 = vsub.f32 %v1721, %v2005
  %v2113 = vsub.f32 %v1724, %v2007
  %v2114 = vsub.f32 %v1729, %v2009
  %v2115 = vsub.f32 %v1732, %v2011
  %v2116 = vsub.f32 %v1737, %v2013
  %v2117 = vsub.f32 %v1740, %v2015
  %v2118 = vsub.f32 %v1745, %v2017
  %v2119 = vsub.f32 %v1748, %v2019
  %v2120 = vsub.f32 %v1753, %v2021
  %v2121 = vsub.f32 %v1756, %v2023
  %v2122 = vsub.f32 %v1761, %v2025
  %v2123 = vsub.f32 %v1764, %v2027
  %v2124 = vsub.f32 %v1769, %v2029
  %v2125 = vsub.f32 %v1772, %v2031
  %v2126 = vsub.f32 %v1777, %v2033
  %v2127 = vsub.f32 %v1780, %v2035
  %v2128 = vsub.f32 %v1785, %v2037
  %v2129 = vsub.f32 %v1788, %v2039
  %v2130 = vsub.f32 %v1793, %v2041
  %v2131 = vsub.f32 %v1796, %v2043
  %v2132 = vsub.f32 %v1801, %v2045
  %v2133 = vsub.f32 %v1804, %v2047
  %v2134 = vsub.f32 %v1809, %v2049
  %v2135 = vsub.f32 %v1812, %v2051
  %v2136 = vsub.f32 %v1817, %v2053
  %v2137 = vsub.f32 %v1820, %v2055
  %v2138 = vsub.f32 %v1825, %v2057
  %v2139 = vsub.f32 %v1828, %v2059
  %v2140 = vsub.f32 %v1833, %v2061
  %v2141 = vsub.f32 %v1836, %v2063
  %v2142 = vsub.f32 %v1841, %v2065
  %v2143 = vsub.f32 %v1844, %v2067
  %v2144 = vsub.f32 %v1849, %v2069
  %v2145 = vsub.f32 %v1852, %v2071
  %v2146 = vsub.f32 %v1857, %v2073
  %v2147 = vsub.f32 %v1860, %v2075
  %v2148 = vsub.f32 %v1865, %v2077
  %v2149 = vsub.f32 %v1868, %v2079
  %v2150 = vsub.f32 %v1873, %v2081
  %v2151 = vsub.f32 %v1876, %v2083
  %v2152 = vsub.f32 %v1881, %v2085
  %v2153 = vsub.f32 %v1884, %v2087
  %v2154 = vsub.f32 %v1889, %v2089
  %v2155 = vsub.f32 %v1892, %v2091
  %v2156 = vsel %vm1899, %v2092, -1e+30
  %v2157 = vsel %vm1899, %v2093, -1e+30
  %v2158 = vsel %vm1899, %v2094, -1e+30
  %v2159 = vsel %vm1899, %v2095, -1e+30
  %v2160 = vsel %vm1899, %v2096, -1e+30
  %v2161 = vsel %vm1899, %v2097, -1e+30
  %v2162 = vsel %vm1899, %v2098, -1e+30
  %v2163 = vsel %vm1899, %v2099, -1e+30
  %v2164 = vsel %vm1899, %v2100, -1e+30
  %v2165 = vsel %vm1899, %v2101, -1e+30
  %v2166 = vsel %vm1899, %v2102, -1e+30
  %v2167 = vsel %vm1899, %v2103, -1e+30
  %v2168 = vsel %vm1899, %v2104, -1e+30
  %v2169 = vsel %vm1899, %v2105, -1e+30
  %v2170 = vsel %vm1899, %v2106, -1e+30
  %v2171 = vsel %vm1899, %v2107, -1e+30
  %v2172 = vsel %vm1899, %v2108, -1e+30
  %v2173 = vsel %vm1899, %v2109, -1e+30
  %v2174 = vsel %vm1899, %v2110, -1e+30
  %v2175 = vsel %vm1899, %v2111, -1e+30
  %v2176 = vsel %vm1899, %v2112, -1e+30
  %v2177 = vsel %vm1899, %v2113, -1e+30
  %v2178 = vsel %vm1899, %v2114, -1e+30
  %v2179 = vsel %vm1899, %v2115, -1e+30
  %v2180 = vsel %vm1899, %v2116, -1e+30
  %v2181 = vsel %vm1899, %v2117, -1e+30
  %v2182 = vsel %vm1899, %v2118, -1e+30
  %v2183 = vsel %vm1899, %v2119, -1e+30
  %v2184 = vsel %vm1899, %v2120, -1e+30
  %v2185 = vsel %vm1899, %v2121, -1e+30
  %v2186 = vsel %vm1899, %v2122, -1e+30
  %v2187 = vsel %vm1899, %v2123, -1e+30
  %v2188 = vsel %vm1899, %v2124, -1e+30
  %v2189 = vsel %vm1899, %v2125, -1e+30
  %v2190 = vsel %vm1899, %v2126, -1e+30
  %v2191 = vsel %vm1899, %v2127, -1e+30
  %v2192 = vsel %vm1899, %v2128, -1e+30
  %v2193 = vsel %vm1899, %v2129, -1e+30
  %v2194 = vsel %vm1899, %v2130, -1e+30
  %v2195 = vsel %vm1899, %v2131, -1e+30
  %v2196 = vsel %vm1899, %v2132, -1e+30
  %v2197 = vsel %vm1899, %v2133, -1e+30
  %v2198 = vsel %vm1899, %v2134, -1e+30
  %v2199 = vsel %vm1899, %v2135, -1e+30
  %v2200 = vsel %vm1899, %v2136, -1e+30
  %v2201 = vsel %vm1899, %v2137, -1e+30
  %v2202 = vsel %vm1899, %v2138, -1e+30
  %v2203 = vsel %vm1899, %v2139, -1e+30
  %v2204 = vsel %vm1899, %v2140, -1e+30
  %v2205 = vsel %vm1899, %v2141, -1e+30
  %v2206 = vsel %vm1899, %v2142, -1e+30
  %v2207 = vsel %vm1899, %v2143, -1e+30
  %v2208 = vsel %vm1899, %v2144, -1e+30
  %v2209 = vsel %vm1899, %v2145, -1e+30
  %v2210 = vsel %vm1899, %v2146, -1e+30
  %v2211 = vsel %vm1899, %v2147, -1e+30
  %v2212 = vsel %vm1899, %v2148, -1e+30
  %v2213 = vsel %vm1899, %v2149, -1e+30
  %v2214 = vsel %vm1899, %v2150, -1e+30
  %v2215 = vsel %vm1899, %v2151, -1e+30
  %v2216 = vsel %vm1899, %v2152, -1e+30
  %v2217 = vsel %vm1899, %v2153, -1e+30
  %v2218 = vsel %vm1899, %v2154, -1e+30
  %v2219 = vsel %vm1899, %v2155, -1e+30
  %v2220 = vmul.f32 %v2156, 1.442695
  %v2221 = vpow.pop %v2220
  %v2222 = vmul.f32 %v2157, 1.442695
  %v2223 = vpow.pop %v2222
  %v2224 = vmul.f32 %v2158, 1.442695
  %v2225 = vpow.pop %v2224
  %v2226 = vmul.f32 %v2159, 1.442695
  %v2227 = vpow.pop %v2226
  %v2228 = vmul.f32 %v2160, 1.442695
  %v2229 = vpow.pop %v2228
  %v2230 = vmul.f32 %v2161, 1.442695
  %v2231 = vpow.pop %v2230
  %v2232 = vmul.f32 %v2162, 1.442695
  %v2233 = vpow.pop %v2232
  %v2234 = vmul.f32 %v2163, 1.442695
  %v2235 = vpow.pop %v2234
  %v2236 = vmul.f32 %v2164, 1.442695
  %v2237 = vpow.pop %v2236
  %v2238 = vmul.f32 %v2165, 1.442695
  %v2239 = vpow.pop %v2238
  %v2240 = vmul.f32 %v2166, 1.442695
  %v2241 = vpow.pop %v2240
  %v2242 = vmul.f32 %v2167, 1.442695
  %v2243 = vpow.pop %v2242
  %v2244 = vmul.f32 %v2168, 1.442695
  %v2245 = vpow.pop %v2244
  %v2246 = vmul.f32 %v2169, 1.442695
  %v2247 = vpow.pop %v2246
  %v2248 = vmul.f32 %v2170, 1.442695
  %v2249 = vpow.pop %v2248
  %v2250 = vmul.f32 %v2171, 1.442695
  %v2251 = vpow.pop %v2250
  %v2252 = vmul.f32 %v2172, 1.442695
  %v2253 = vpow.pop %v2252
  %v2254 = vmul.f32 %v2173, 1.442695
  %v2255 = vpow.pop %v2254
  %v2256 = vmul.f32 %v2174, 1.442695
  %v2257 = vpow.pop %v2256
  %v2258 = vmul.f32 %v2175, 1.442695
  %v2259 = vpow.pop %v2258
  %v2260 = vmul.f32 %v2176, 1.442695
  %v2261 = vpow.pop %v2260
  %v2262 = vmul.f32 %v2177, 1.442695
  %v2263 = vpow.pop %v2262
  %v2264 = vmul.f32 %v2178, 1.442695
  %v2265 = vpow.pop %v2264
  %v2266 = vmul.f32 %v2179, 1.442695
  %v2267 = vpow.pop %v2266
  %v2268 = vmul.f32 %v2180, 1.442695
  %v2269 = vpow.pop %v2268
  %v2270 = vmul.f32 %v2181, 1.442695
  %v2271 = vpow.pop %v2270
  %v2272 = vmul.f32 %v2182, 1.442695
  %v2273 = vpow.pop %v2272
  %v2274 = vmul.f32 %v2183, 1.442695
  %v2275 = vpow.pop %v2274
  %v2276 = vmul.f32 %v2184, 1.442695
  %v2277 = vpow.pop %v2276
  %v2278 = vmul.f32 %v2185, 1.442695
  %v2279 = vpow.pop %v2278
  %v2280 = vmul.f32 %v2186, 1.442695
  %v2281 = vpow.pop %v2280
  %v2282 = vmul.f32 %v2187, 1.442695
  %v2283 = vpow.pop %v2282
  %v2284 = vmul.f32 %v2188, 1.442695
  %v2285 = vpow.pop %v2284
  %v2286 = vmul.f32 %v2189, 1.442695
  %v2287 = vpow.pop %v2286
  %v2288 = vmul.f32 %v2190, 1.442695
  %v2289 = vpow.pop %v2288
  %v2290 = vmul.f32 %v2191, 1.442695
  %v2291 = vpow.pop %v2290
  %v2292 = vmul.f32 %v2192, 1.442695
  %v2293 = vpow.pop %v2292
  %v2294 = vmul.f32 %v2193, 1.442695
  %v2295 = vpow.pop %v2294
  %v2296 = vmul.f32 %v2194, 1.442695
  %v2297 = vpow.pop %v2296
  %v2298 = vmul.f32 %v2195, 1.442695
  %v2299 = vpow.pop %v2298
  %v2300 = vmul.f32 %v2196, 1.442695
  %v2301 = vpow.pop %v2300
  %v2302 = vmul.f32 %v2197, 1.442695
  %v2303 = vpow.pop %v2302
  %v2304 = vmul.f32 %v2198, 1.442695
  %v2305 = vpow.pop %v2304
  %v2306 = vmul.f32 %v2199, 1.442695
  %v2307 = vpow.pop %v2306
  %v2308 = vmul.f32 %v2200, 1.442695
  %v2309 = vpow.pop %v2308
  %v2310 = vmul.f32 %v2201, 1.442695
  %v2311 = vpow.pop %v2310
  %v2312 = vmul.f32 %v2202, 1.442695
  %v2313 = vpow.pop %v2312
  %v2314 = vmul.f32 %v2203, 1.442695
  %v2315 = vpow.pop %v2314
  %v2316 = vmul.f32 %v2204, 1.442695
  %v2317 = vpow.pop %v2316
  %v2318 = vmul.f32 %v2205, 1.442695
  %v2319 = vpow.pop %v2318
  %v2320 = vmul.f32 %v2206, 1.442695
  %v2321 = vpow.pop %v2320
  %v2322 = vmul.f32 %v2207, 1.442695
  %v2323 = vpow.pop %v2322
  %v2324 = vmul.f32 %v2208, 1.442695
  %v2325 = vpow.pop %v2324
  %v2326 = vmul.f32 %v2209, 1.442695
  %v2327 = vpow.pop %v2326
  %v2328 = vmul.f32 %v2210, 1.442695
  %v2329 = vpow.pop %v2328
  %v2330 = vmul.f32 %v2211, 1.442695
  %v2331 = vpow.pop %v2330
  %v2332 = vmul.f32 %v2212, 1.442695
  %v2333 = vpow.pop %v2332
  %v2334 = vmul.f32 %v2213, 1.442695
  %v2335 = vpow.pop %v2334
  %v2336 = vmul.f32 %v2214, 1.442695
  %v2337 = vpow.pop %v2336
  %v2338 = vmul.f32 %v2215, 1.442695
  %v2339 = vpow.pop %v2338
  %v2340 = vmul.f32 %v2216, 1.442695
  %v2341 = vpow.pop %v2340
  %v2342 = vmul.f32 %v2217, 1.442695
  %v2343 = vpow.pop %v2342
  %v2344 = vmul.f32 %v2218, 1.442695
  %v2345 = vpow.pop %v2344
  %v2346 = vmul.f32 %v2219, 1.442695
  %v2347 = vpow.pop %v2346
  %2348 = vadd.xlane.f32.xlu0 %v2221
  %v2349 = vpop.xlane.xlu0 %2348
  %2350 = vadd.xlane.f32.xlu0 %v2223
  %v2351 = vpop.xlane.xlu0 %2350
  %2352 = vadd.xlane.f32.xlu0 %v2225
  %v2353 = vpop.xlane.xlu0 %2352
  %2354 = vadd.xlane.f32.xlu0 %v2227
  %v2355 = vpop.xlane.xlu0 %2354
  %2356 = vadd.xlane.f32.xlu0 %v2229
  %v2357 = vpop.xlane.xlu0 %2356
  %2358 = vadd.xlane.f32.xlu0 %v2231
  %v2359 = vpop.xlane.xlu0 %2358
  %2360 = vadd.xlane.f32.xlu0 %v2233
  %v2361 = vpop.xlane.xlu0 %2360
  %2362 = vadd.xlane.f32.xlu0 %v2235
  %v2363 = vpop.xlane.xlu0 %2362
  %2364 = vadd.xlane.f32.xlu0 %v2237
  %v2365 = vpop.xlane.xlu0 %2364
  %2366 = vadd.xlane.f32.xlu0 %v2239
  %v2367 = vpop.xlane.xlu0 %2366
  %2368 = vadd.xlane.f32.xlu0 %v2241
  %v2369 = vpop.xlane.xlu0 %2368
  %2370 = vadd.xlane.f32.xlu0 %v2243
  %v2371 = vpop.xlane.xlu0 %2370
  %2372 = vadd.xlane.f32.xlu0 %v2245
  %v2373 = vpop.xlane.xlu0 %2372
  %2374 = vadd.xlane.f32.xlu0 %v2247
  %v2375 = vpop.xlane.xlu0 %2374
  %2376 = vadd.xlane.f32.xlu0 %v2249
  %v2377 = vpop.xlane.xlu0 %2376
  %2378 = vadd.xlane.f32.xlu0 %v2251
  %v2379 = vpop.xlane.xlu0 %2378
  %2380 = vadd.xlane.f32.xlu0 %v2253
  %v2381 = vpop.xlane.xlu0 %2380
  %2382 = vadd.xlane.f32.xlu0 %v2255
  %v2383 = vpop.xlane.xlu0 %2382
  %2384 = vadd.xlane.f32.xlu0 %v2257
  %v2385 = vpop.xlane.xlu0 %2384
  %2386 = vadd.xlane.f32.xlu0 %v2259
  %v2387 = vpop.xlane.xlu0 %2386
  %2388 = vadd.xlane.f32.xlu0 %v2261
  %v2389 = vpop.xlane.xlu0 %2388
  %2390 = vadd.xlane.f32.xlu0 %v2263
  %v2391 = vpop.xlane.xlu0 %2390
  %2392 = vadd.xlane.f32.xlu0 %v2265
  %v2393 = vpop.xlane.xlu0 %2392
  %2394 = vadd.xlane.f32.xlu0 %v2267
  %v2395 = vpop.xlane.xlu0 %2394
  %2396 = vadd.xlane.f32.xlu0 %v2269
  %v2397 = vpop.xlane.xlu0 %2396
  %2398 = vadd.xlane.f32.xlu0 %v2271
  %v2399 = vpop.xlane.xlu0 %2398
  %2400 = vadd.xlane.f32.xlu0 %v2273
  %v2401 = vpop.xlane.xlu0 %2400
  %2402 = vadd.xlane.f32.xlu0 %v2275
  %v2403 = vpop.xlane.xlu0 %2402
  %2404 = vadd.xlane.f32.xlu0 %v2277
  %v2405 = vpop.xlane.xlu0 %2404
  %2406 = vadd.xlane.f32.xlu0 %v2279
  %v2407 = vpop.xlane.xlu0 %2406
  %2408 = vadd.xlane.f32.xlu0 %v2281
  %v2409 = vpop.xlane.xlu0 %2408
  %2410 = vadd.xlane.f32.xlu0 %v2283
  %v2411 = vpop.xlane.xlu0 %2410
  %2412 = vadd.xlane.f32.xlu0 %v2285
  %v2413 = vpop.xlane.xlu0 %2412
  %2414 = vadd.xlane.f32.xlu0 %v2287
  %v2415 = vpop.xlane.xlu0 %2414
  %2416 = vadd.xlane.f32.xlu0 %v2289
  %v2417 = vpop.xlane.xlu0 %2416
  %2418 = vadd.xlane.f32.xlu0 %v2291
  %v2419 = vpop.xlane.xlu0 %2418
  %2420 = vadd.xlane.f32.xlu0 %v2293
  %v2421 = vpop.xlane.xlu0 %2420
  %2422 = vadd.xlane.f32.xlu0 %v2295
  %v2423 = vpop.xlane.xlu0 %2422
  %2424 = vadd.xlane.f32.xlu0 %v2297
  %v2425 = vpop.xlane.xlu0 %2424
  %2426 = vadd.xlane.f32.xlu0 %v2299
  %v2427 = vpop.xlane.xlu0 %2426
  %2428 = vadd.xlane.f32.xlu0 %v2301
  %v2429 = vpop.xlane.xlu0 %2428
  %2430 = vadd.xlane.f32.xlu0 %v2303
  %v2431 = vpop.xlane.xlu0 %2430
  %2432 = vadd.xlane.f32.xlu0 %v2305
  %v2433 = vpop.xlane.xlu0 %2432
  %2434 = vadd.xlane.f32.xlu0 %v2307
  %v2435 = vpop.xlane.xlu0 %2434
  %2436 = vadd.xlane.f32.xlu0 %v2309
  %v2437 = vpop.xlane.xlu0 %2436
  %2438 = vadd.xlane.f32.xlu0 %v2311
  %v2439 = vpop.xlane.xlu0 %2438
  %2440 = vadd.xlane.f32.xlu0 %v2313
  %v2441 = vpop.xlane.xlu0 %2440
  %2442 = vadd.xlane.f32.xlu0 %v2315
  %v2443 = vpop.xlane.xlu0 %2442
  %2444 = vadd.xlane.f32.xlu0 %v2317
  %v2445 = vpop.xlane.xlu0 %2444
  %2446 = vadd.xlane.f32.xlu0 %v2319
  %v2447 = vpop.xlane.xlu0 %2446
  %2448 = vadd.xlane.f32.xlu0 %v2321
  %v2449 = vpop.xlane.xlu0 %2448
  %2450 = vadd.xlane.f32.xlu0 %v2323
  %v2451 = vpop.xlane.xlu0 %2450
  %2452 = vadd.xlane.f32.xlu0 %v2325
  %v2453 = vpop.xlane.xlu0 %2452
  %2454 = vadd.xlane.f32.xlu0 %v2327
  %v2455 = vpop.xlane.xlu0 %2454
  %2456 = vadd.xlane.f32.xlu0 %v2329
  %v2457 = vpop.xlane.xlu0 %2456
  %2458 = vadd.xlane.f32.xlu0 %v2331
  %v2459 = vpop.xlane.xlu0 %2458
  %2460 = vadd.xlane.f32.xlu0 %v2333
  %v2461 = vpop.xlane.xlu0 %2460
  %2462 = vadd.xlane.f32.xlu0 %v2335
  %v2463 = vpop.xlane.xlu0 %2462
  %2464 = vadd.xlane.f32.xlu0 %v2337
  %v2465 = vpop.xlane.xlu0 %2464
  %2466 = vadd.xlane.f32.xlu0 %v2339
  %v2467 = vpop.xlane.xlu0 %2466
  %2468 = vadd.xlane.f32.xlu0 %v2341
  %v2469 = vpop.xlane.xlu0 %2468
  %2470 = vadd.xlane.f32.xlu0 %v2343
  %v2471 = vpop.xlane.xlu0 %2470
  %2472 = vadd.xlane.f32.xlu0 %v2345
  %v2473 = vpop.xlane.xlu0 %2472
  %2474 = vadd.xlane.f32.xlu0 %v2347
  %v2475 = vpop.xlane.xlu0 %2474
  %v2476 = vrcp.pop %v2349
  %v2477 = vmul.f32 %v2221, %v2476
  %v2478 = vrcp.pop %v2351
  %v2479 = vmul.f32 %v2223, %v2478
  %v2480 = vrcp.pop %v2353
  %v2481 = vmul.f32 %v2225, %v2480
  %v2482 = vrcp.pop %v2355
  %v2483 = vmul.f32 %v2227, %v2482
  %v2484 = vrcp.pop %v2357
  %v2485 = vmul.f32 %v2229, %v2484
  %v2486 = vrcp.pop %v2359
  %v2487 = vmul.f32 %v2231, %v2486
  %v2488 = vrcp.pop %v2361
  %v2489 = vmul.f32 %v2233, %v2488
  %v2490 = vrcp.pop %v2363
  %v2491 = vmul.f32 %v2235, %v2490
  %v2492 = vrcp.pop %v2365
  %v2493 = vmul.f32 %v2237, %v2492
  %v2494 = vrcp.pop %v2367
  %v2495 = vmul.f32 %v2239, %v2494
  %v2496 = vrcp.pop %v2369
  %v2497 = vmul.f32 %v2241, %v2496
  %v2498 = vrcp.pop %v2371
  %v2499 = vmul.f32 %v2243, %v2498
  %v2500 = vrcp.pop %v2373
  %v2501 = vmul.f32 %v2245, %v2500
  %v2502 = vrcp.pop %v2375
  %v2503 = vmul.f32 %v2247, %v2502
  %v2504 = vrcp.pop %v2377
  %v2505 = vmul.f32 %v2249, %v2504
  %v2506 = vrcp.pop %v2379
  %v2507 = vmul.f32 %v2251, %v2506
  %v2508 = vrcp.pop %v2381
  %v2509 = vmul.f32 %v2253, %v2508
  %v2510 = vrcp.pop %v2383
  %v2511 = vmul.f32 %v2255, %v2510
  %v2512 = vrcp.pop %v2385
  %v2513 = vmul.f32 %v2257, %v2512
  %v2514 = vrcp.pop %v2387
  %v2515 = vmul.f32 %v2259, %v2514
  %v2516 = vrcp.pop %v2389
  %v2517 = vmul.f32 %v2261, %v2516
  %v2518 = vrcp.pop %v2391
  %v2519 = vmul.f32 %v2263, %v2518
  %v2520 = vrcp.pop %v2393
  %v2521 = vmul.f32 %v2265, %v2520
  %v2522 = vrcp.pop %v2395
  %v2523 = vmul.f32 %v2267, %v2522
  %v2524 = vrcp.pop %v2397
  %v2525 = vmul.f32 %v2269, %v2524
  %v2526 = vrcp.pop %v2399
  %v2527 = vmul.f32 %v2271, %v2526
  %v2528 = vrcp.pop %v2401
  %v2529 = vmul.f32 %v2273, %v2528
  %v2530 = vrcp.pop %v2403
  %v2531 = vmul.f32 %v2275, %v2530
  %v2532 = vrcp.pop %v2405
  %v2533 = vmul.f32 %v2277, %v2532
  %v2534 = vrcp.pop %v2407
  %v2535 = vmul.f32 %v2279, %v2534
  %v2536 = vrcp.pop %v2409
  %v2537 = vmul.f32 %v2281, %v2536
  %v2538 = vrcp.pop %v2411
  %v2539 = vmul.f32 %v2283, %v2538
  %v2540 = vrcp.pop %v2413
  %v2541 = vmul.f32 %v2285, %v2540
  %v2542 = vrcp.pop %v2415
  %v2543 = vmul.f32 %v2287, %v2542
  %v2544 = vrcp.pop %v2417
  %v2545 = vmul.f32 %v2289, %v2544
  %v2546 = vrcp.pop %v2419
  %v2547 = vmul.f32 %v2291, %v2546
  %v2548 = vrcp.pop %v2421
  %v2549 = vmul.f32 %v2293, %v2548
  %v2550 = vrcp.pop %v2423
  %v2551 = vmul.f32 %v2295, %v2550
  %v2552 = vrcp.pop %v2425
  %v2553 = vmul.f32 %v2297, %v2552
  %v2554 = vrcp.pop %v2427
  %v2555 = vmul.f32 %v2299, %v2554
  %v2556 = vrcp.pop %v2429
  %v2557 = vmul.f32 %v2301, %v2556
  %v2558 = vrcp.pop %v2431
  %v2559 = vmul.f32 %v2303, %v2558
  %v2560 = vrcp.pop %v2433
  %v2561 = vmul.f32 %v2305, %v2560
  %v2562 = vrcp.pop %v2435
  %v2563 = vmul.f32 %v2307, %v2562
  %v2564 = vrcp.pop %v2437
  %v2565 = vmul.f32 %v2309, %v2564
  %v2566 = vrcp.pop %v2439
  %v2567 = vmul.f32 %v2311, %v2566
  %v2568 = vrcp.pop %v2441
  %v2569 = vmul.f32 %v2313, %v2568
  %v2570 = vrcp.pop %v2443
  %v2571 = vmul.f32 %v2315, %v2570
  %v2572 = vrcp.pop %v2445
  %v2573 = vmul.f32 %v2317, %v2572
  %v2574 = vrcp.pop %v2447
  %v2575 = vmul.f32 %v2319, %v2574
  %v2576 = vrcp.pop %v2449
  %v2577 = vmul.f32 %v2321, %v2576
  %v2578 = vrcp.pop %v2451
  %v2579 = vmul.f32 %v2323, %v2578
  %v2580 = vrcp.pop %v2453
  %v2581 = vmul.f32 %v2325, %v2580
  %v2582 = vrcp.pop %v2455
  %v2583 = vmul.f32 %v2327, %v2582
  %v2584 = vrcp.pop %v2457
  %v2585 = vmul.f32 %v2329, %v2584
  %v2586 = vrcp.pop %v2459
  %v2587 = vmul.f32 %v2331, %v2586
  %v2588 = vrcp.pop %v2461
  %v2589 = vmul.f32 %v2333, %v2588
  %v2590 = vrcp.pop %v2463
  %v2591 = vmul.f32 %v2335, %v2590
  %v2592 = vrcp.pop %v2465
  %v2593 = vmul.f32 %v2337, %v2592
  %v2594 = vrcp.pop %v2467
  %v2595 = vmul.f32 %v2339, %v2594
  %v2596 = vrcp.pop %v2469
  %v2597 = vmul.f32 %v2341, %v2596
  %v2598 = vrcp.pop %v2471
  %v2599 = vmul.f32 %v2343, %v2598
  %v2600 = vrcp.pop %v2473
  %v2601 = vmul.f32 %v2345, %v2600
  %v2602 = vrcp.pop %v2475
  %v2603 = vmul.f32 %v2347, %v2602
  %vm2604 = vcmp.eq.s32.totalorder %v1896, 3
  %v2605 = vsel %vm2604, 1, 0
  %vm2606 = vcmp.eq.s32.totalorder %v2605, 1
  %v2607 = vsel %vm2606, %v1641, %v2477
  %v2608 = vsel %vm2606, %v1644, %v2479
  %v2609 = vsel %vm2606, %v1649, %v2481
  %v2610 = vsel %vm2606, %v1652, %v2483
  %v2611 = vsel %vm2606, %v1657, %v2485
  %v2612 = vsel %vm2606, %v1660, %v2487
  %v2613 = vsel %vm2606, %v1665, %v2489
  %v2614 = vsel %vm2606, %v1668, %v2491
  %v2615 = vsel %vm2606, %v1673, %v2493
  %v2616 = vsel %vm2606, %v1676, %v2495
  %v2617 = vsel %vm2606, %v1681, %v2497
  %v2618 = vsel %vm2606, %v1684, %v2499
  %v2619 = vsel %vm2606, %v1689, %v2501
  %v2620 = vsel %vm2606, %v1692, %v2503
  %v2621 = vsel %vm2606, %v1697, %v2505
  %v2622 = vsel %vm2606, %v1700, %v2507
  %v2623 = vsel %vm2606, %v1705, %v2509
  %v2624 = vsel %vm2606, %v1708, %v2511
  %v2625 = vsel %vm2606, %v1713, %v2513
  %v2626 = vsel %vm2606, %v1716, %v2515
  %v2627 = vsel %vm2606, %v1721, %v2517
  %v2628 = vsel %vm2606, %v1724, %v2519
  %v2629 = vsel %vm2606, %v1729, %v2521
  %v2630 = vsel %vm2606, %v1732, %v2523
  %v2631 = vsel %vm2606, %v1737, %v2525
  %v2632 = vsel %vm2606, %v1740, %v2527
  %v2633 = vsel %vm2606, %v1745, %v2529
  %v2634 = vsel %vm2606, %v1748, %v2531
  %v2635 = vsel %vm2606, %v1753, %v2533
  %v2636 = vsel %vm2606, %v1756, %v2535
  %v2637 = vsel %vm2606, %v1761, %v2537
  %v2638 = vsel %vm2606, %v1764, %v2539
  %v2639 = vsel %vm2606, %v1769, %v2541
  %v2640 = vsel %vm2606, %v1772, %v2543
  %v2641 = vsel %vm2606, %v1777, %v2545
  %v2642 = vsel %vm2606, %v1780, %v2547
  %v2643 = vsel %vm2606, %v1785, %v2549
  %v2644 = vsel %vm2606, %v1788, %v2551
  %v2645 = vsel %vm2606, %v1793, %v2553
  %v2646 = vsel %vm2606, %v1796, %v2555
  %v2647 = vsel %vm2606, %v1801, %v2557
  %v2648 = vsel %vm2606, %v1804, %v2559
  %v2649 = vsel %vm2606, %v1809, %v2561
  %v2650 = vsel %vm2606, %v1812, %v2563
  %v2651 = vsel %vm2606, %v1817, %v2565
  %v2652 = vsel %vm2606, %v1820, %v2567
  %v2653 = vsel %vm2606, %v1825, %v2569
  %v2654 = vsel %vm2606, %v1828, %v2571
  %v2655 = vsel %vm2606, %v1833, %v2573
  %v2656 = vsel %vm2606, %v1836, %v2575
  %v2657 = vsel %vm2606, %v1841, %v2577
  %v2658 = vsel %vm2606, %v1844, %v2579
  %v2659 = vsel %vm2606, %v1849, %v2581
  %v2660 = vsel %vm2606, %v1852, %v2583
  %v2661 = vsel %vm2606, %v1857, %v2585
  %v2662 = vsel %vm2606, %v1860, %v2587
  %v2663 = vsel %vm2606, %v1865, %v2589
  %v2664 = vsel %vm2606, %v1868, %v2591
  %v2665 = vsel %vm2606, %v1873, %v2593
  %v2666 = vsel %vm2606, %v1876, %v2595
  %v2667 = vsel %vm2606, %v1881, %v2597
  %v2668 = vsel %vm2606, %v1884, %v2599
  %v2669 = vsel %vm2606, %v1889, %v2601
  %v2670 = vsel %vm2606, %v1892, %v2603
  %2671 = vst [vmem:[%s9] sm:$0xff] %v2607
  %2672 = vst [vmem:[%s9 + $0x8] sm:$0xff] %v2608
  %2673 = vst [vmem:[%s9 + $0x10] sm:$0xff] %v2609
  %2674 = vst [vmem:[%s9 + $0x18] sm:$0xff] %v2610
  %2675 = vst [vmem:[%s9 + $0x20] sm:$0xff] %v2611
  %2676 = vst [vmem:[%s9 + $0x28] sm:$0xff] %v2612
  %2677 = vst [vmem:[%s9 + $0x30] sm:$0xff] %v2613
  %2678 = vst [vmem:[%s9 + $0x38] sm:$0xff] %v2614
  %2679 = vst [vmem:[%s9 + $0x40] sm:$0xff] %v2615
  %2680 = vst [vmem:[%s9 + $0x48] sm:$0xff] %v2616
  %2681 = vst [vmem:[%s9 + $0x50] sm:$0xff] %v2617
  %2682 = vst [vmem:[%s9 + $0x58] sm:$0xff] %v2618
  %2683 = vst [vmem:[%s9 + $0x60] sm:$0xff] %v2619
  %2684 = vst [vmem:[%s9 + $0x68] sm:$0xff] %v2620
  %2685 = vst [vmem:[%s9 + $0x70] sm:$0xff] %v2621
  %2686 = vst [vmem:[%s9 + $0x78] sm:$0xff] %v2622
  %2687 = vst [vmem:[%s9 + $0x80] sm:$0xff] %v2623
  %2688 = vst [vmem:[%s9 + $0x88] sm:$0xff] %v2624
  %2689 = vst [vmem:[%s9 + $0x90] sm:$0xff] %v2625
  %2690 = vst [vmem:[%s9 + $0x98] sm:$0xff] %v2626
  %2691 = vst [vmem:[%s9 + $0xa0] sm:$0xff] %v2627
  %2692 = vst [vmem:[%s9 + $0xa8] sm:$0xff] %v2628
  %2693 = vst [vmem:[%s9 + $0xb0] sm:$0xff] %v2629
  %2694 = vst [vmem:[%s9 + $0xb8] sm:$0xff] %v2630
  %2695 = vst [vmem:[%s9 + $0xc0] sm:$0xff] %v2631
  %2696 = vst [vmem:[%s9 + $0xc8] sm:$0xff] %v2632
  %2697 = vst [vmem:[%s9 + $0xd0] sm:$0xff] %v2633
  %2698 = vst [vmem:[%s9 + $0xd8] sm:$0xff] %v2634
  %2699 = vst [vmem:[%s9 + $0xe0] sm:$0xff] %v2635
  %2700 = vst [vmem:[%s9 + $0xe8] sm:$0xff] %v2636
  %2701 = vst [vmem:[%s9 + $0xf0] sm:$0xff] %v2637
  %2702 = vst [vmem:[%s9 + $0xf8] sm:$0xff] %v2638
  %2703 = vst [vmem:[%s9 + $0x100] sm:$0xff] %v2639
  %2704 = vst [vmem:[%s9 + $0x108] sm:$0xff] %v2640
  %2705 = vst [vmem:[%s9 + $0x110] sm:$0xff] %v2641
  %2706 = vst [vmem:[%s9 + $0x118] sm:$0xff] %v2642
  %2707 = vst [vmem:[%s9 + $0x120] sm:$0xff] %v2643
  %2708 = vst [vmem:[%s9 + $0x128] sm:$0xff] %v2644
  %2709 = vst [vmem:[%s9 + $0x130] sm:$0xff] %v2645
  %2710 = vst [vmem:[%s9 + $0x138] sm:$0xff] %v2646
  %2711 = vst [vmem:[%s9 + $0x140] sm:$0xff] %v2647
  %2712 = vst [vmem:[%s9 + $0x148] sm:$0xff] %v2648
  %2713 = vst [vmem:[%s9 + $0x150] sm:$0xff] %v2649
  %2714 = vst [vmem:[%s9 + $0x158] sm:$0xff] %v2650
  %2715 = vst [vmem:[%s9 + $0x160] sm:$0xff] %v2651
  %2716 = vst [vmem:[%s9 + $0x168] sm:$0xff] %v2652
  %2717 = vst [vmem:[%s9 + $0x170] sm:$0xff] %v2653
  %2718 = vst [vmem:[%s9 + $0x178] sm:$0xff] %v2654
  %2719 = vst [vmem:[%s9 + $0x180] sm:$0xff] %v2655
  %2720 = vst [vmem:[%s9 + $0x188] sm:$0xff] %v2656
  %2721 = vst [vmem:[%s9 + $0x190] sm:$0xff] %v2657
  %2722 = vst [vmem:[%s9 + $0x198] sm:$0xff] %v2658
  %2723 = vst [vmem:[%s9 + $0x1a0] sm:$0xff] %v2659
  %2724 = vst [vmem:[%s9 + $0x1a8] sm:$0xff] %v2660
  %2725 = vst [vmem:[%s9 + $0x1b0] sm:$0xff] %v2661
  %2726 = vst [vmem:[%s9 + $0x1b8] sm:$0xff] %v2662
  %2727 = vst [vmem:[%s9 + $0x1c0] sm:$0xff] %v2663
  %2728 = vst [vmem:[%s9 + $0x1c8] sm:$0xff] %v2664
  %2729 = vst [vmem:[%s9 + $0x1d0] sm:$0xff] %v2665
  %2730 = vst [vmem:[%s9 + $0x1d8] sm:$0xff] %v2666
  %2731 = vst [vmem:[%s9 + $0x1e0] sm:$0xff] %v2667
  %2732 = vst [vmem:[%s9 + $0x1e8] sm:$0xff] %v2668
  %2733 = vst [vmem:[%s9 + $0x1f0] sm:$0xff] %v2669
  %2734 = vst [vmem:[%s9 + $0x1f8] sm:$0xff] %v2670
  // Predicated region
  $region38: #{_actor_critic_forward.1} parent=0 // pred_check
    _
  $region39: #{_actor_critic_forward.1} parent=0 // pred_check_branch
    %2736 = sbr.rel (0) target = $region41
  $region40: #{_actor_critic_forward.1} parent=0 // pred_region
    _
  $region41: #{_actor_critic_forward.1} parent=0 // pred_fallthru
    _
  // Predicated region
  $region42: #{_actor_critic_forward.1} parent=0 // pred_check
    _
  $region43: #{_actor_critic_forward.1} parent=0 // pred_check_branch
    %2738 = sbr.rel (0) target = $region45
  $region44: #{_actor_critic_forward.1} parent=0 // pred_region
    _
  $region45: #{_actor_critic_forward.1} parent=0 // pred_fallthru
    _

</llo_original>
